<compile_context>
chip_gen: v7x
topology: tpu7x:2x2x1
jax: 0.10.0
libtpu: 0.0.40
codegen_flags: <defaults>
</compile_context>

<pallas_src>
import math

import jax
import jax.numpy as jnp
from jax.experimental import pallas as pl
from jax.experimental.pallas import tpu as pltpu


def _round_up(n, m):
    return ((n + m - 1) // m) * m


def _leaky_relu(x, negative_slope=0.2):
    return jnp.where(x >= 0, x, negative_slope * x)


def disc_kernel(x_ref,
                w1_ref, b1_ref,
                w2_ref, b2_ref,
                w3_ref, b3_ref,
                w4_ref, b4_ref,
                o_ref):
    # Fused 4-layer MLP: matmuls on the MXU (bf16 operands, f32 accumulate),
    # bias/LeakyReLU on the VPU in f32, activations never leave VMEM/vregs.
    x = x_ref[...]                                                  # (tile, K) bf16

    h = jnp.dot(x, w1_ref[...], preferred_element_type=jnp.float32) + b1_ref[...]
    h = _leaky_relu(h)

    h = jnp.dot(h.astype(jnp.bfloat16), w2_ref[...],
                preferred_element_type=jnp.float32) + b2_ref[...]
    h = _leaky_relu(h)

    h = jnp.dot(h.astype(jnp.bfloat16), w3_ref[...],
                preferred_element_type=jnp.float32) + b3_ref[...]
    h = _leaky_relu(h)

    # Final Linear(hidden -> 1): an N=1 matmul wastes an almost-empty MXU pass, so
    # compute it as an elementwise multiply + lane reduction (VPU/XLU slots) in f32.
    out = jnp.sum(h * w4_ref[...], axis=-1, keepdims=True) + b4_ref[...]
    o_ref[...] = out.astype(o_ref.dtype)


def discriminator_forward(x, params, *, batch_tile=256):
    """x: (B, im_dim) float32. params: list of (W, b) with W (in, out), b (1, out)."""
    B, im_dim = x.shape
    (w1, b1), (w2, b2), (w3, b3), (w4, b4) = params
    out_dim = w4.shape[1]

    # Pad K of the first (dominant) matmul to a multiple of 128 lanes; zero padding
    # is numerically exact.
    k_pad = _round_up(im_dim, 128)
    if k_pad != im_dim:
        x = jnp.pad(x, ((0, 0), (0, k_pad - im_dim)))
        w1 = jnp.pad(w1, ((0, k_pad - im_dim), (0, 0)))

    # MXU-friendly batch tile; pad ragged batches instead of forcing tiny tiles.
    tile = _round_up(min(batch_tile, _round_up(B, 8)), 8)
    b_pad = _round_up(B, tile)
    if b_pad != B:
        x = jnp.pad(x, ((0, b_pad - B), (0, 0)))
    grid = b_pad // tile  # >= 2 tiles at large B so v7x's 2nd TensorCore is used

    # bf16 operands for the MXU (accumulation stays f32 inside the kernel).
    x_b = x.astype(jnp.bfloat16)
    w1_b = w1.astype(jnp.bfloat16)
    w2_b = w2.astype(jnp.bfloat16)
    w3_b = w3.astype(jnp.bfloat16)
    # Final layer stays f32 (VPU reduction, not a matmul); lay it out as a (1, hidden)
    # row so it broadcasts directly against the activations.
    w4_row = jnp.asarray(w4, jnp.float32).reshape(1, -1)
    b1f, b2f, b3f, b4f = (jnp.asarray(b, jnp.float32) for b in (b1, b2, b3, b4))

    # Grid-invariant blocks (weights/biases): resident in VMEM, single-buffered.
    def const_spec(arr):
        return pl.BlockSpec(arr.shape, lambda i: (0,) * arr.ndim,
                            pipeline_mode=pl.Buffered(1))

    grid_spec = pltpu.PrefetchScalarGridSpec(
        num_scalar_prefetch=0,
        grid=(grid,),
        in_specs=[
            pl.BlockSpec((tile, k_pad), lambda i: (i, 0)),
            const_spec(w1_b), const_spec(b1f),
            const_spec(w2_b), const_spec(b2f),
            const_spec(w3_b), const_spec(b3f),
            const_spec(w4_row), const_spec(b4f),
        ],
        out_specs=pl.BlockSpec((tile, out_dim), lambda i: (i, 0)),
    )

    out = pl.pallas_call(
        disc_kernel,
        out_shape=jax.ShapeDtypeStruct((b_pad, out_dim), jnp.float32),
        grid_spec=grid_spec,
        compiler_params=pltpu.CompilerParams(
            dimension_semantics=("parallel",),
        ),
    )(x_b, w1_b, b1f, w2_b, b2f, w3_b, b3f, w4_row, b4f)

    return out[:B]


def init_params(key, im_dim=784, hidden_dim=128):
    """Deterministic init mimicking PyTorch nn.Linear default (U[-1/sqrt(in), 1/sqrt(in)])."""
    dims = [im_dim, hidden_dim * 4, hidden_dim * 2, hidden_dim, 1]
    params = []
    for din, dout in zip(dims[:-1], dims[1:]):
        key, kw, kb = jax.random.split(key, 3)
        bound = 1.0 / math.sqrt(din)
        w = jax.random.uniform(kw, (din, dout), jnp.float32, -bound, bound)
        b = jax.random.uniform(kb, (1, dout), jnp.float32, -bound, bound)
        params.append((w, b))
    return params


def reference_forward(x, params):
    """Pure-f32 reference matching the PyTorch module."""
    h = x
    for i, (w, b) in enumerate(params):
        h = jnp.dot(h, w, precision=jax.lax.Precision.HIGHEST) + b
        if i < len(params) - 1:
            h = jnp.where(h >= 0, h, 0.2 * h)
    return h


def reference_forward_bf16(x, params):
    """Reference mirroring the kernel's bf16-operand / f32-accumulate policy."""
    q = lambda a: a.astype(jnp.bfloat16).astype(jnp.float32)
    h = q(x)
    n = len(params)
    for i, (w, b) in enumerate(params):
        w_use = q(w) if i < n - 1 else jnp.asarray(w, jnp.float32)
        h = jnp.dot(h, w_use, precision=jax.lax.Precision.HIGHEST) + b
        if i < n - 1:
            h = jnp.where(h >= 0, h, 0.2 * h)
            h = q(h)
    return h


if __name__ == "__main__":
    key = jax.random.PRNGKey(0)
    k_params, k_x = jax.random.split(key)

    im_dim, hidden_dim, batch = 784, 128, 50  # ragged batch exercises the pad path
    params = init_params(k_params, im_dim=im_dim, hidden_dim=hidden_dim)
    x = jax.random.normal(k_x, (batch, im_dim), dtype=jnp.float32)

    out = jax.block_until_ready(discriminator_forward(x, params))
    assert out.shape == (batch, 1), out.shape

    ref_bf16 = reference_forward_bf16(x, params)
    assert jnp.allclose(out, ref_bf16, atol=5e-3, rtol=5e-3), (
        f"max abs err vs bf16 ref = {jnp.max(jnp.abs(out - ref_bf16))}"
    )

    ref_f32 = reference_forward(x, params)
    assert jnp.allclose(out, ref_f32, atol=1e-1, rtol=1e-1), (
        f"max abs err vs f32 ref = {jnp.max(jnp.abs(out - ref_f32))}"
    )

    print("KERNEL_OK")
</pallas_src>

<mosaic_0001>
module attributes {stable_mosaic.version = 11 : i64} {
  func.func @disc_kernel(%arg0: i32, %arg1: memref<56x896xbf16, #tpu.memory_space<vmem>>, %arg2: memref<896x512xbf16, #tpu.memory_space<vmem>>, %arg3: memref<1x512xf32, #tpu.memory_space<vmem>>, %arg4: memref<512x256xbf16, #tpu.memory_space<vmem>>, %arg5: memref<1x256xf32, #tpu.memory_space<vmem>>, %arg6: memref<256x128xbf16, #tpu.memory_space<vmem>>, %arg7: memref<1x128xf32, #tpu.memory_space<vmem>>, %arg8: memref<1x128xf32, #tpu.memory_space<vmem>>, %arg9: memref<1x1xf32, #tpu.memory_space<vmem>>, %arg10: memref<56x1xf32, #tpu.memory_space<vmem>>) attributes {dimension_semantics = [#tpu.dimension_semantics<parallel>], iteration_bounds = array<i64: 1>, scalar_prefetch = 0 : i64, scratch_operands = 0 : i64, tpu.core_type = #tpu.core_type<tc>, window_params = [{transform_indices = @transform_0, window_bounds = array<i64: 56, 896>}, {pipeline_mode = #tpu.pipeline_mode<synchronous>, transform_indices = @transform_1, window_bounds = array<i64: 896, 512>}, {pipeline_mode = #tpu.pipeline_mode<synchronous>, transform_indices = @transform_2, window_bounds = array<i64: 1, 512>}, {pipeline_mode = #tpu.pipeline_mode<synchronous>, transform_indices = @transform_3, window_bounds = array<i64: 512, 256>}, {pipeline_mode = #tpu.pipeline_mode<synchronous>, transform_indices = @transform_4, window_bounds = array<i64: 1, 256>}, {pipeline_mode = #tpu.pipeline_mode<synchronous>, transform_indices = @transform_5, window_bounds = array<i64: 256, 128>}, {pipeline_mode = #tpu.pipeline_mode<synchronous>, transform_indices = @transform_6, window_bounds = array<i64: 1, 128>}, {pipeline_mode = #tpu.pipeline_mode<synchronous>, transform_indices = @transform_7, window_bounds = array<i64: 1, 128>}, {pipeline_mode = #tpu.pipeline_mode<synchronous>, transform_indices = @transform_8, window_bounds = array<i64: 1, 1>}, {transform_indices = @transform_9, window_bounds = array<i64: 56, 1>}]} {
    %c0 = arith.constant 0 : index
    %c0_0 = arith.constant 0 : index
    %0 = vector.load %arg1[%c0, %c0_0] : memref<56x896xbf16, #tpu.memory_space<vmem>>, vector<56x896xbf16>
    %c0_1 = arith.constant 0 : index
    %c0_2 = arith.constant 0 : index
    %1 = vector.load %arg2[%c0_1, %c0_2] : memref<896x512xbf16, #tpu.memory_space<vmem>>, vector<896x512xbf16>
    %cst = arith.constant dense<0.000000e+00> : vector<56x512xf32>
    %2 = tpu.matmul %0, %1, %cst {dimension_numbers = #tpu.dot_dimension_numbers<[1], [0], [0], [1], [0, 0, 1, 1], [], []>} : vector<56x896xbf16>, vector<896x512xbf16>, vector<56x512xf32> -> vector<56x512xf32>
    %c0_3 = arith.constant 0 : index
    %c0_4 = arith.constant 0 : index
    %3 = vector.load %arg3[%c0_3, %c0_4] : memref<1x512xf32, #tpu.memory_space<vmem>>, vector<1x512xf32>
    %4 = vector.broadcast %3 : vector<1x512xf32> to vector<56x512xf32>
    %5 = arith.addf %2, %4 : vector<56x512xf32>
    %cst_5 = arith.constant 0.000000e+00 : f32
    %6 = vector.broadcast %cst_5 : f32 to vector<56x512xf32>
    %7 = arith.cmpf oge, %5, %6 : vector<56x512xf32>
    %cst_6 = arith.constant 2.000000e-01 : f32
    %8 = vector.broadcast %cst_6 : f32 to vector<56x512xf32>
    %9 = arith.mulf %8, %5 : vector<56x512xf32>
    %10 = arith.select %7, %5, %9 : vector<56x512xi1>, vector<56x512xf32>
    %11 = arith.truncf %10 : vector<56x512xf32> to vector<56x512xbf16>
    %c0_7 = arith.constant 0 : index
    %c0_8 = arith.constant 0 : index
    %12 = vector.load %arg4[%c0_7, %c0_8] : memref<512x256xbf16, #tpu.memory_space<vmem>>, vector<512x256xbf16>
    %cst_9 = arith.constant dense<0.000000e+00> : vector<56x256xf32>
    %13 = tpu.matmul %11, %12, %cst_9 {dimension_numbers = #tpu.dot_dimension_numbers<[1], [0], [0], [1], [0, 0, 1, 1], [], []>} : vector<56x512xbf16>, vector<512x256xbf16>, vector<56x256xf32> -> vector<56x256xf32>
    %c0_10 = arith.constant 0 : index
    %c0_11 = arith.constant 0 : index
    %14 = vector.load %arg5[%c0_10, %c0_11] : memref<1x256xf32, #tpu.memory_space<vmem>>, vector<1x256xf32>
    %15 = vector.broadcast %14 : vector<1x256xf32> to vector<56x256xf32>
    %16 = arith.addf %13, %15 : vector<56x256xf32>
    %cst_12 = arith.constant 0.000000e+00 : f32
    %17 = vector.broadcast %cst_12 : f32 to vector<56x256xf32>
    %18 = arith.cmpf oge, %16, %17 : vector<56x256xf32>
    %cst_13 = arith.constant 2.000000e-01 : f32
    %19 = vector.broadcast %cst_13 : f32 to vector<56x256xf32>
    %20 = arith.mulf %19, %16 : vector<56x256xf32>
    %21 = arith.select %18, %16, %20 : vector<56x256xi1>, vector<56x256xf32>
    %22 = arith.truncf %21 : vector<56x256xf32> to vector<56x256xbf16>
    %c0_14 = arith.constant 0 : index
    %c0_15 = arith.constant 0 : index
    %23 = vector.load %arg6[%c0_14, %c0_15] : memref<256x128xbf16, #tpu.memory_space<vmem>>, vector<256x128xbf16>
    %cst_16 = arith.constant dense<0.000000e+00> : vector<56x128xf32>
    %24 = tpu.matmul %22, %23, %cst_16 {dimension_numbers = #tpu.dot_dimension_numbers<[1], [0], [0], [1], [0, 0, 1, 1], [], []>} : vector<56x256xbf16>, vector<256x128xbf16>, vector<56x128xf32> -> vector<56x128xf32>
    %c0_17 = arith.constant 0 : index
    %c0_18 = arith.constant 0 : index
    %25 = vector.load %arg7[%c0_17, %c0_18] : memref<1x128xf32, #tpu.memory_space<vmem>>, vector<1x128xf32>
    %26 = vector.broadcast %25 : vector<1x128xf32> to vector<56x128xf32>
    %27 = arith.addf %24, %26 : vector<56x128xf32>
    %cst_19 = arith.constant 0.000000e+00 : f32
    %28 = vector.broadcast %cst_19 : f32 to vector<56x128xf32>
    %29 = arith.cmpf oge, %27, %28 : vector<56x128xf32>
    %cst_20 = arith.constant 2.000000e-01 : f32
    %30 = vector.broadcast %cst_20 : f32 to vector<56x128xf32>
    %31 = arith.mulf %30, %27 : vector<56x128xf32>
    %32 = arith.select %29, %27, %31 : vector<56x128xi1>, vector<56x128xf32>
    %c0_21 = arith.constant 0 : index
    %c0_22 = arith.constant 0 : index
    %33 = vector.load %arg8[%c0_21, %c0_22] : memref<1x128xf32, #tpu.memory_space<vmem>>, vector<1x128xf32>
    %34 = vector.broadcast %33 : vector<1x128xf32> to vector<56x128xf32>
    %35 = arith.mulf %32, %34 : vector<56x128xf32>
    %cst_23 = arith.constant dense<0.000000e+00> : vector<56xf32>
    %36 = vector.multi_reduction <add>, %35, %cst_23 [1] : vector<56x128xf32> to vector<56xf32>
    %37 = vector.shape_cast %36 : vector<56xf32> to vector<56x1xf32>
    %c0_24 = arith.constant 0 : index
    %c0_25 = arith.constant 0 : index
    %38 = vector.load %arg9[%c0_24, %c0_25] : memref<1x1xf32, #tpu.memory_space<vmem>>, vector<1x1xf32>
    %39 = vector.broadcast %38 : vector<1x1xf32> to vector<56x1xf32>
    %40 = arith.addf %37, %39 : vector<56x1xf32>
    %c0_26 = arith.constant 0 : index
    %c0_27 = arith.constant 0 : index
    %41 = vector.load %arg10[%c0_26, %c0_27] : memref<56x1xf32, #tpu.memory_space<vmem>>, vector<56x1xf32>
    tpu.vector_store %arg10[%c0_26, %c0_27], %40 {strides = array<i32>} : memref<56x1xf32, #tpu.memory_space<vmem>>, vector<56x1xf32>,
    return
  }
  func.func @transform_0(%arg0: i32) -> (i32, i32) {
    %c0_i32 = arith.constant 0 : i32
    %c0_i32_0 = arith.constant 0 : i32
    return %arg0, %c0_i32 : i32, i32
  }
  func.func @transform_1(%arg0: i32) -> (i32, i32) {
    %c0_i32 = arith.constant 0 : i32
    %c0_i32_0 = arith.constant 0 : i32
    %c0_i32_1 = arith.constant 0 : i32
    return %c0_i32, %c0_i32_0 : i32, i32
  }
  func.func @transform_2(%arg0: i32) -> (i32, i32) {
    %c0_i32 = arith.constant 0 : i32
    %c0_i32_0 = arith.constant 0 : i32
    %c0_i32_1 = arith.constant 0 : i32
    return %c0_i32, %c0_i32_0 : i32, i32
  }
  func.func @transform_3(%arg0: i32) -> (i32, i32) {
    %c0_i32 = arith.constant 0 : i32
    %c0_i32_0 = arith.constant 0 : i32
    %c0_i32_1 = arith.constant 0 : i32
    return %c0_i32, %c0_i32_0 : i32, i32
  }
  func.func @transform_4(%arg0: i32) -> (i32, i32) {
    %c0_i32 = arith.constant 0 : i32
    %c0_i32_0 = arith.constant 0 : i32
    %c0_i32_1 = arith.constant 0 : i32
    return %c0_i32, %c0_i32_0 : i32, i32
  }
  func.func @transform_5(%arg0: i32) -> (i32, i32) {
    %c0_i32 = arith.constant 0 : i32
    %c0_i32_0 = arith.constant 0 : i32
    %c0_i32_1 = arith.constant 0 : i32
    return %c0_i32, %c0_i32_0 : i32, i32
  }
  func.func @transform_6(%arg0: i32) -> (i32, i32) {
    %c0_i32 = arith.constant 0 : i32
    %c0_i32_0 = arith.constant 0 : i32
    %c0_i32_1 = arith.constant 0 : i32
    return %c0_i32, %c0_i32_0 : i32, i32
  }
  func.func @transform_7(%arg0: i32) -> (i32, i32) {
    %c0_i32 = arith.constant 0 : i32
    %c0_i32_0 = arith.constant 0 : i32
    %c0_i32_1 = arith.constant 0 : i32
    return %c0_i32, %c0_i32_0 : i32, i32
  }
  func.func @transform_8(%arg0: i32) -> (i32, i32) {
    %c0_i32 = arith.constant 0 : i32
    %c0_i32_0 = arith.constant 0 : i32
    %c0_i32_1 = arith.constant 0 : i32
    return %c0_i32, %c0_i32_0 : i32, i32
  }
  func.func @transform_9(%arg0: i32) -> (i32, i32) {
    %c0_i32 = arith.constant 0 : i32
    %c0_i32_0 = arith.constant 0 : i32
    return %arg0, %c0_i32 : i32, i32
  }
}

</mosaic_0001>

<llo_original>
// kernel: tpu_custom_call.1
$region0: #{tpu_custom_call.1}
  #allocation0 [shape = 'u32[]', space=smem, size = 0x4, offset = 0x4, fixed_abs, tag = 'smem constant byte address 0x4 - core index']
  #allocation1 [shape = 'u32[144,128]{1,0:T(1,128)}', space=vmem, size = 0x12000, scoped, tag = 'internal scratch']
  #allocation2 [shape = 'f32[1,1]{1,0:T(1,128)S(1)}', space=vmem, size = 0x200, scoped, tag = 'scoped memory for tpu_custom_call.1']
  %s0 = inlined_call_operand.hbm [shape: bf16[56,896], index: 0, kind: input, shape index: {}]
  %s1 = inlined_call_operand.hbm [shape: bf16[896,512], index: 1, kind: input, shape index: {}]
  %s2 = inlined_call_operand.vmem [shape: f32[1,512], index: 2, kind: input, shape index: {}]
  %s3 = inlined_call_operand.hbm [shape: bf16[512,256], index: 3, kind: input, shape index: {}]
  %s4 = inlined_call_operand.vmem [shape: f32[1,256], index: 4, kind: input, shape index: {}]
  %s5 = inlined_call_operand.hbm [shape: bf16[256,128], index: 5, kind: input, shape index: {}]
  %s6 = inlined_call_operand.vmem [shape: f32[1,128], index: 6, kind: input, shape index: {}]
  %s7 = inlined_call_operand.vmem [shape: f32[1,128], index: 7, kind: input, shape index: {}]
  %s8 = inlined_call_operand.<no memory space> [shape: f32[1,1], index: 8, kind: input, shape index: {}]
  %s9 = inlined_call_operand.vmem [shape: f32[56,1], index: 9, kind: output, shape index: {}]
  %s10 = sld [smem:[#allocation0]]
  $region62: #{tpu_custom_call.1} parent=0
    _
  %s12 = ssub.s32 1, %s10
  %s13 = scalar_select 0, %s12, %s10
  %v14 = vstv %s8
  %15 = vst [vmem:[#allocation2] sm:$0x1] %v14
  $region1: #{tpu_custom_call.1} parent=0
    #allocation3 [shape = 'u8[100352]{0}', space=vmem, size = 0x18800, scoped, tag = 'input window, operand 0, single buffered']
    #allocation4 [shape = 's32[1]{0}', space=sflag, size = 0x4, scoped, tag = 'scoped memory for tpu_custom_call.1']
    #allocation5 [shape = 'u8[917504]{0}', space=vmem, size = 0xe0000, scoped, tag = 'input window, operand 1, single buffered']
    #allocation6 [shape = 's32[1]{0}', space=sflag, size = 0x4, scoped, tag = 'scoped memory for tpu_custom_call.1']
    #allocation7 [shape = 'u8[262144]{0}', space=vmem, size = 0x40000, scoped, tag = 'input window, operand 3, single buffered']
    #allocation8 [shape = 'u8[65536]{0}', space=vmem, size = 0x10000, scoped, tag = 'input window, operand 5, single buffered']
    #allocation9 [shape = 's32[1]{0}', space=sflag, size = 0x4, scoped, tag = 'scoped memory for tpu_custom_call.1']
    %16 = vsyncpa [#allocation4], 0
    %17 = vsyncpa [#allocation6], 0
    %18 = vsyncpa [#allocation9], 0
    // Predicated region
    $region2: #{tpu_custom_call.1} parent=1 // pred_check
      _
    $region3: #{tpu_custom_call.1} parent=1 // pred_check_branch
      %20 = sbr.rel (0) target = $region5
    $region4: #{tpu_custom_call.1} parent=1 // pred_region
      %s22 = ssub.s32 3136, 3136
      %23 = vsyncadd [#allocation4], %s22
      %s24 = sshll.u32 [#allocation3], 4
      %s25 = int_to_ptr.vmem [resolvable:$true] %s24
      %30 = dma.hbm_to_vmem [thread:$0]  %s0, 3136, %s25, [#allocation4], 448, 448, 28
    $region5: #{tpu_custom_call.1} parent=1 // pred_fallthru
      _
    // Predicated region
    $region6: #{tpu_custom_call.1} parent=1 // pred_check
      _
    $region7: #{tpu_custom_call.1} parent=1 // pred_check_branch
      %32 = sbr.rel (0) target = $region9
    $region8: #{tpu_custom_call.1} parent=1 // pred_region
      %s34 = ssub.s32 28672, 28672
      %35 = vsyncadd [#allocation6], %s34
      %s36 = sshll.u32 [#allocation5], 4
      %s37 = int_to_ptr.vmem [resolvable:$true] %s36
      %42 = dma.hbm_to_vmem [thread:$0]  %s1, 28672, %s37, [#allocation6], 256, 256, 16
    $region9: #{tpu_custom_call.1} parent=1 // pred_fallthru
      _
    // Predicated region
    $region10: #{tpu_custom_call.1} parent=1 // pred_check
      _
    $region11: #{tpu_custom_call.1} parent=1 // pred_check_branch
      %44 = sbr.rel (0) target = $region13
    $region12: #{tpu_custom_call.1} parent=1 // pred_region
      _
    $region13: #{tpu_custom_call.1} parent=1 // pred_fallthru
      _
    // Predicated region
    $region14: #{tpu_custom_call.1} parent=1 // pred_check
      _
    $region15: #{tpu_custom_call.1} parent=1 // pred_check_branch
      %46 = sbr.rel (0) target = $region17
    $region16: #{tpu_custom_call.1} parent=1 // pred_region
      %s48 = ssub.s32 8192, 8192
      %49 = vsyncadd [#allocation6], %s48
      %s50 = sshll.u32 [#allocation7], 4
      %s51 = int_to_ptr.vmem [resolvable:$true] %s50
      %56 = dma.hbm_to_vmem [thread:$0]  %s3, 8192, %s51, [#allocation6], 128, 128, 8
    $region17: #{tpu_custom_call.1} parent=1 // pred_fallthru
      _
    // Predicated region
    $region18: #{tpu_custom_call.1} parent=1 // pred_check
      _
    $region19: #{tpu_custom_call.1} parent=1 // pred_check_branch
      %58 = sbr.rel (0) target = $region21
    $region20: #{tpu_custom_call.1} parent=1 // pred_region
      _
    $region21: #{tpu_custom_call.1} parent=1 // pred_fallthru
      _
    // Predicated region
    $region22: #{tpu_custom_call.1} parent=1 // pred_check
      _
    $region23: #{tpu_custom_call.1} parent=1 // pred_check_branch
      %60 = sbr.rel (0) target = $region25
    $region24: #{tpu_custom_call.1} parent=1 // pred_region
      %s62 = ssub.s32 2048, 2048
      %63 = vsyncadd [#allocation9], %s62
      %s64 = sshll.u32 [#allocation8], 4
      %s65 = int_to_ptr.vmem [resolvable:$true] %s64
      %70 = dma.hbm_to_vmem [thread:$0]  %s5, 2048, %s65, [#allocation9], 64, 64, 4
    $region25: #{tpu_custom_call.1} parent=1 // pred_fallthru
      _
    // Predicated region
    $region26: #{tpu_custom_call.1} parent=1 // pred_check
      _
    $region27: #{tpu_custom_call.1} parent=1 // pred_check_branch
      %72 = sbr.rel (0) target = $region29
    $region28: #{tpu_custom_call.1} parent=1 // pred_region
      _
    $region29: #{tpu_custom_call.1} parent=1 // pred_fallthru
      _
    // Predicated region
    $region30: #{tpu_custom_call.1} parent=1 // pred_check
      _
    $region31: #{tpu_custom_call.1} parent=1 // pred_check_branch
      %74 = sbr.rel (0) target = $region33
    $region32: #{tpu_custom_call.1} parent=1 // pred_region
      _
    $region33: #{tpu_custom_call.1} parent=1 // pred_fallthru
      _
    // Predicated region
    $region34: #{tpu_custom_call.1} parent=1 // pred_check
      _
    $region35: #{tpu_custom_call.1} parent=1 // pred_check_branch
      %76 = sbr.rel (0) target = $region37
    $region36: #{tpu_custom_call.1} parent=1 // pred_region
      _
    $region37: #{tpu_custom_call.1} parent=1 // pred_fallthru
      _
    // Predicated region
    $region38: #{tpu_custom_call.1} parent=1 // pred_check
      _
    $region39: #{tpu_custom_call.1} parent=1 // pred_check_branch
      %78 = sbr.rel (0) target = $region41
    $region40: #{tpu_custom_call.1} parent=1 // pred_region
      %79 = dma.done [#allocation4], 3136
    $region41: #{tpu_custom_call.1} parent=1 // pred_fallthru
      _
    // Predicated region
    $region42: #{tpu_custom_call.1} parent=1 // pred_check
      _
    $region43: #{tpu_custom_call.1} parent=1 // pred_check_branch
      %81 = sbr.rel (0) target = $region45
    $region44: #{tpu_custom_call.1} parent=1 // pred_region
      %82 = dma.done [#allocation6], 28672
    $region45: #{tpu_custom_call.1} parent=1 // pred_fallthru
      _
    // Predicated region
    $region46: #{tpu_custom_call.1} parent=1 // pred_check
      _
    $region47: #{tpu_custom_call.1} parent=1 // pred_check_branch
      %84 = sbr.rel (0) target = $region49
    $region48: #{tpu_custom_call.1} parent=1 // pred_region
      %85 = dma.done [#allocation6], 8192
    $region49: #{tpu_custom_call.1} parent=1 // pred_fallthru
      _
    // Predicated region
    $region50: #{tpu_custom_call.1} parent=1 // pred_check
      _
    $region51: #{tpu_custom_call.1} parent=1 // pred_check_branch
      %87 = sbr.rel (0) target = $region53
    $region52: #{tpu_custom_call.1} parent=1 // pred_region
      %88 = dma.done [#allocation9], 2048
    $region53: #{tpu_custom_call.1} parent=1 // pred_fallthru
      _
    %v90 = vld [vmem:[#allocation3] sm:$0xff]
    %v91 = vld [vmem:[#allocation3 + $0x8] sm:$0xff]
    %v92 = vld [vmem:[#allocation3 + $0x10] sm:$0xff]
    %v93 = vld [vmem:[#allocation3 + $0x18] sm:$0xf]
    %v94 = vld [vmem:[#allocation3 + $0x1c] sm:$0xff]
    %v95 = vld [vmem:[#allocation3 + $0x24] sm:$0xff]
    %v96 = vld [vmem:[#allocation3 + $0x2c] sm:$0xff]
    %v97 = vld [vmem:[#allocation3 + $0x34] sm:$0xf]
    %v98 = vld [vmem:[#allocation3 + $0x38] sm:$0xff]
    %v99 = vld [vmem:[#allocation3 + $0x40] sm:$0xff]
    %v100 = vld [vmem:[#allocation3 + $0x48] sm:$0xff]
    %v101 = vld [vmem:[#allocation3 + $0x50] sm:$0xf]
    %v102 = vld [vmem:[#allocation3 + $0x54] sm:$0xff]
    %v103 = vld [vmem:[#allocation3 + $0x5c] sm:$0xff]
    %v104 = vld [vmem:[#allocation3 + $0x64] sm:$0xff]
    %v105 = vld [vmem:[#allocation3 + $0x6c] sm:$0xf]
    %v106 = vld [vmem:[#allocation3 + $0x70] sm:$0xff]
    %v107 = vld [vmem:[#allocation3 + $0x78] sm:$0xff]
    %v108 = vld [vmem:[#allocation3 + $0x80] sm:$0xff]
    %v109 = vld [vmem:[#allocation3 + $0x88] sm:$0xf]
    %v110 = vld [vmem:[#allocation3 + $0x8c] sm:$0xff]
    %v111 = vld [vmem:[#allocation3 + $0x94] sm:$0xff]
    %v112 = vld [vmem:[#allocation3 + $0x9c] sm:$0xff]
    %v113 = vld [vmem:[#allocation3 + $0xa4] sm:$0xf]
    %v114 = vld [vmem:[#allocation3 + $0xa8] sm:$0xff]
    %v115 = vld [vmem:[#allocation3 + $0xb0] sm:$0xff]
    %v116 = vld [vmem:[#allocation3 + $0xb8] sm:$0xff]
    %v117 = vld [vmem:[#allocation3 + $0xc0] sm:$0xf]
    %v118 = vld [vmem:[#allocation5] sm:$0xff]
    %v119 = vld [vmem:[#allocation5 + $0x8] sm:$0xff]
    %v120 = vld [vmem:[#allocation5 + $0x10] sm:$0xff]
    %v121 = vld [vmem:[#allocation5 + $0x18] sm:$0xff]
    %v122 = vld [vmem:[#allocation5 + $0x20] sm:$0xff]
    %v123 = vld [vmem:[#allocation5 + $0x28] sm:$0xff]
    %v124 = vld [vmem:[#allocation5 + $0x30] sm:$0xff]
    %v125 = vld [vmem:[#allocation5 + $0x38] sm:$0xff]
    %v126 = vld [vmem:[#allocation5 + $0x40] sm:$0xff]
    %v127 = vld [vmem:[#allocation5 + $0x48] sm:$0xff]
    %v128 = vld [vmem:[#allocation5 + $0x50] sm:$0xff]
    %v129 = vld [vmem:[#allocation5 + $0x58] sm:$0xff]
    %v130 = vld [vmem:[#allocation5 + $0x60] sm:$0xff]
    %v131 = vld [vmem:[#allocation5 + $0x68] sm:$0xff]
    %v132 = vld [vmem:[#allocation5 + $0x70] sm:$0xff]
    %v133 = vld [vmem:[#allocation5 + $0x78] sm:$0xff]
    %v134 = vld [vmem:[#allocation5 + $0x80] sm:$0xff]
    %v135 = vld [vmem:[#allocation5 + $0x88] sm:$0xff]
    %v136 = vld [vmem:[#allocation5 + $0x90] sm:$0xff]
    %v137 = vld [vmem:[#allocation5 + $0x98] sm:$0xff]
    %v138 = vld [vmem:[#allocation5 + $0xa0] sm:$0xff]
    %v139 = vld [vmem:[#allocation5 + $0xa8] sm:$0xff]
    %v140 = vld [vmem:[#allocation5 + $0xb0] sm:$0xff]
    %v141 = vld [vmem:[#allocation5 + $0xb8] sm:$0xff]
    %v142 = vld [vmem:[#allocation5 + $0xc0] sm:$0xff]
    %v143 = vld [vmem:[#allocation5 + $0xc8] sm:$0xff]
    %v144 = vld [vmem:[#allocation5 + $0xd0] sm:$0xff]
    %v145 = vld [vmem:[#allocation5 + $0xd8] sm:$0xff]
    %v146 = vld [vmem:[#allocation5 + $0xe0] sm:$0xff]
    %v147 = vld [vmem:[#allocation5 + $0xe8] sm:$0xff]
    %v148 = vld [vmem:[#allocation5 + $0xf0] sm:$0xff]
    %v149 = vld [vmem:[#allocation5 + $0xf8] sm:$0xff]
    %v150 = vld [vmem:[#allocation5 + $0x100] sm:$0xff]
    %v151 = vld [vmem:[#allocation5 + $0x108] sm:$0xff]
    %v152 = vld [vmem:[#allocation5 + $0x110] sm:$0xff]
    %v153 = vld [vmem:[#allocation5 + $0x118] sm:$0xff]
    %v154 = vld [vmem:[#allocation5 + $0x120] sm:$0xff]
    %v155 = vld [vmem:[#allocation5 + $0x128] sm:$0xff]
    %v156 = vld [vmem:[#allocation5 + $0x130] sm:$0xff]
    %v157 = vld [vmem:[#allocation5 + $0x138] sm:$0xff]
    %v158 = vld [vmem:[#allocation5 + $0x140] sm:$0xff]
    %v159 = vld [vmem:[#allocation5 + $0x148] sm:$0xff]
    %v160 = vld [vmem:[#allocation5 + $0x150] sm:$0xff]
    %v161 = vld [vmem:[#allocation5 + $0x158] sm:$0xff]
    %v162 = vld [vmem:[#allocation5 + $0x160] sm:$0xff]
    %v163 = vld [vmem:[#allocation5 + $0x168] sm:$0xff]
    %v164 = vld [vmem:[#allocation5 + $0x170] sm:$0xff]
    %v165 = vld [vmem:[#allocation5 + $0x178] sm:$0xff]
    %v166 = vld [vmem:[#allocation5 + $0x180] sm:$0xff]
    %v167 = vld [vmem:[#allocation5 + $0x188] sm:$0xff]
    %v168 = vld [vmem:[#allocation5 + $0x190] sm:$0xff]
    %v169 = vld [vmem:[#allocation5 + $0x198] sm:$0xff]
    %v170 = vld [vmem:[#allocation5 + $0x1a0] sm:$0xff]
    %v171 = vld [vmem:[#allocation5 + $0x1a8] sm:$0xff]
    %v172 = vld [vmem:[#allocation5 + $0x1b0] sm:$0xff]
    %v173 = vld [vmem:[#allocation5 + $0x1b8] sm:$0xff]
    %v174 = vld [vmem:[#allocation5 + $0x1c0] sm:$0xff]
    %v175 = vld [vmem:[#allocation5 + $0x1c8] sm:$0xff]
    %v176 = vld [vmem:[#allocation5 + $0x1d0] sm:$0xff]
    %v177 = vld [vmem:[#allocation5 + $0x1d8] sm:$0xff]
    %v178 = vld [vmem:[#allocation5 + $0x1e0] sm:$0xff]
    %v179 = vld [vmem:[#allocation5 + $0x1e8] sm:$0xff]
    %v180 = vld [vmem:[#allocation5 + $0x1f0] sm:$0xff]
    %v181 = vld [vmem:[#allocation5 + $0x1f8] sm:$0xff]
    %v182 = vld [vmem:[#allocation5 + $0x200] sm:$0xff]
    %v183 = vld [vmem:[#allocation5 + $0x208] sm:$0xff]
    %v184 = vld [vmem:[#allocation5 + $0x210] sm:$0xff]
    %v185 = vld [vmem:[#allocation5 + $0x218] sm:$0xff]
    %v186 = vld [vmem:[#allocation5 + $0x220] sm:$0xff]
    %v187 = vld [vmem:[#allocation5 + $0x228] sm:$0xff]
    %v188 = vld [vmem:[#allocation5 + $0x230] sm:$0xff]
    %v189 = vld [vmem:[#allocation5 + $0x238] sm:$0xff]
    %v190 = vld [vmem:[#allocation5 + $0x240] sm:$0xff]
    %v191 = vld [vmem:[#allocation5 + $0x248] sm:$0xff]
    %v192 = vld [vmem:[#allocation5 + $0x250] sm:$0xff]
    %v193 = vld [vmem:[#allocation5 + $0x258] sm:$0xff]
    %v194 = vld [vmem:[#allocation5 + $0x260] sm:$0xff]
    %v195 = vld [vmem:[#allocation5 + $0x268] sm:$0xff]
    %v196 = vld [vmem:[#allocation5 + $0x270] sm:$0xff]
    %v197 = vld [vmem:[#allocation5 + $0x278] sm:$0xff]
    %v198 = vld [vmem:[#allocation5 + $0x280] sm:$0xff]
    %v199 = vld [vmem:[#allocation5 + $0x288] sm:$0xff]
    %v200 = vld [vmem:[#allocation5 + $0x290] sm:$0xff]
    %v201 = vld [vmem:[#allocation5 + $0x298] sm:$0xff]
    %v202 = vld [vmem:[#allocation5 + $0x2a0] sm:$0xff]
    %v203 = vld [vmem:[#allocation5 + $0x2a8] sm:$0xff]
    %v204 = vld [vmem:[#allocation5 + $0x2b0] sm:$0xff]
    %v205 = vld [vmem:[#allocation5 + $0x2b8] sm:$0xff]
    %v206 = vld [vmem:[#allocation5 + $0x2c0] sm:$0xff]
    %v207 = vld [vmem:[#allocation5 + $0x2c8] sm:$0xff]
    %v208 = vld [vmem:[#allocation5 + $0x2d0] sm:$0xff]
    %v209 = vld [vmem:[#allocation5 + $0x2d8] sm:$0xff]
    %v210 = vld [vmem:[#allocation5 + $0x2e0] sm:$0xff]
    %v211 = vld [vmem:[#allocation5 + $0x2e8] sm:$0xff]
    %v212 = vld [vmem:[#allocation5 + $0x2f0] sm:$0xff]
    %v213 = vld [vmem:[#allocation5 + $0x2f8] sm:$0xff]
    %v214 = vld [vmem:[#allocation5 + $0x300] sm:$0xff]
    %v215 = vld [vmem:[#allocation5 + $0x308] sm:$0xff]
    %v216 = vld [vmem:[#allocation5 + $0x310] sm:$0xff]
    %v217 = vld [vmem:[#allocation5 + $0x318] sm:$0xff]
    %v218 = vld [vmem:[#allocation5 + $0x320] sm:$0xff]
    %v219 = vld [vmem:[#allocation5 + $0x328] sm:$0xff]
    %v220 = vld [vmem:[#allocation5 + $0x330] sm:$0xff]
    %v221 = vld [vmem:[#allocation5 + $0x338] sm:$0xff]
    %v222 = vld [vmem:[#allocation5 + $0x340] sm:$0xff]
    %v223 = vld [vmem:[#allocation5 + $0x348] sm:$0xff]
    %v224 = vld [vmem:[#allocation5 + $0x350] sm:$0xff]
    %v225 = vld [vmem:[#allocation5 + $0x358] sm:$0xff]
    %v226 = vld [vmem:[#allocation5 + $0x360] sm:$0xff]
    %v227 = vld [vmem:[#allocation5 + $0x368] sm:$0xff]
    %v228 = vld [vmem:[#allocation5 + $0x370] sm:$0xff]
    %v229 = vld [vmem:[#allocation5 + $0x378] sm:$0xff]
    %v230 = vld [vmem:[#allocation5 + $0x380] sm:$0xff]
    %v231 = vld [vmem:[#allocation5 + $0x388] sm:$0xff]
    %v232 = vld [vmem:[#allocation5 + $0x390] sm:$0xff]
    %v233 = vld [vmem:[#allocation5 + $0x398] sm:$0xff]
    %v234 = vld [vmem:[#allocation5 + $0x3a0] sm:$0xff]
    %v235 = vld [vmem:[#allocation5 + $0x3a8] sm:$0xff]
    %v236 = vld [vmem:[#allocation5 + $0x3b0] sm:$0xff]
    %v237 = vld [vmem:[#allocation5 + $0x3b8] sm:$0xff]
    %v238 = vld [vmem:[#allocation5 + $0x3c0] sm:$0xff]
    %v239 = vld [vmem:[#allocation5 + $0x3c8] sm:$0xff]
    %v240 = vld [vmem:[#allocation5 + $0x3d0] sm:$0xff]
    %v241 = vld [vmem:[#allocation5 + $0x3d8] sm:$0xff]
    %v242 = vld [vmem:[#allocation5 + $0x3e0] sm:$0xff]
    %v243 = vld [vmem:[#allocation5 + $0x3e8] sm:$0xff]
    %v244 = vld [vmem:[#allocation5 + $0x3f0] sm:$0xff]
    %v245 = vld [vmem:[#allocation5 + $0x3f8] sm:$0xff]
    %v246 = vld [vmem:[#allocation5 + $0x400] sm:$0xff]
    %v247 = vld [vmem:[#allocation5 + $0x408] sm:$0xff]
    %v248 = vld [vmem:[#allocation5 + $0x410] sm:$0xff]
    %v249 = vld [vmem:[#allocation5 + $0x418] sm:$0xff]
    %v250 = vld [vmem:[#allocation5 + $0x420] sm:$0xff]
    %v251 = vld [vmem:[#allocation5 + $0x428] sm:$0xff]
    %v252 = vld [vmem:[#allocation5 + $0x430] sm:$0xff]
    %v253 = vld [vmem:[#allocation5 + $0x438] sm:$0xff]
    %v254 = vld [vmem:[#allocation5 + $0x440] sm:$0xff]
    %v255 = vld [vmem:[#allocation5 + $0x448] sm:$0xff]
    %v256 = vld [vmem:[#allocation5 + $0x450] sm:$0xff]
    %v257 = vld [vmem:[#allocation5 + $0x458] sm:$0xff]
    %v258 = vld [vmem:[#allocation5 + $0x460] sm:$0xff]
    %v259 = vld [vmem:[#allocation5 + $0x468] sm:$0xff]
    %v260 = vld [vmem:[#allocation5 + $0x470] sm:$0xff]
    %v261 = vld [vmem:[#allocation5 + $0x478] sm:$0xff]
    %v262 = vld [vmem:[#allocation5 + $0x480] sm:$0xff]
    %v263 = vld [vmem:[#allocation5 + $0x488] sm:$0xff]
    %v264 = vld [vmem:[#allocation5 + $0x490] sm:$0xff]
    %v265 = vld [vmem:[#allocation5 + $0x498] sm:$0xff]
    %v266 = vld [vmem:[#allocation5 + $0x4a0] sm:$0xff]
    %v267 = vld [vmem:[#allocation5 + $0x4a8] sm:$0xff]
    %v268 = vld [vmem:[#allocation5 + $0x4b0] sm:$0xff]
    %v269 = vld [vmem:[#allocation5 + $0x4b8] sm:$0xff]
    %v270 = vld [vmem:[#allocation5 + $0x4c0] sm:$0xff]
    %v271 = vld [vmem:[#allocation5 + $0x4c8] sm:$0xff]
    %v272 = vld [vmem:[#allocation5 + $0x4d0] sm:$0xff]
    %v273 = vld [vmem:[#allocation5 + $0x4d8] sm:$0xff]
    %v274 = vld [vmem:[#allocation5 + $0x4e0] sm:$0xff]
    %v275 = vld [vmem:[#allocation5 + $0x4e8] sm:$0xff]
    %v276 = vld [vmem:[#allocation5 + $0x4f0] sm:$0xff]
    %v277 = vld [vmem:[#allocation5 + $0x4f8] sm:$0xff]
    %v278 = vld [vmem:[#allocation5 + $0x500] sm:$0xff]
    %v279 = vld [vmem:[#allocation5 + $0x508] sm:$0xff]
    %v280 = vld [vmem:[#allocation5 + $0x510] sm:$0xff]
    %v281 = vld [vmem:[#allocation5 + $0x518] sm:$0xff]
    %v282 = vld [vmem:[#allocation5 + $0x520] sm:$0xff]
    %v283 = vld [vmem:[#allocation5 + $0x528] sm:$0xff]
    %v284 = vld [vmem:[#allocation5 + $0x530] sm:$0xff]
    %v285 = vld [vmem:[#allocation5 + $0x538] sm:$0xff]
    %v286 = vld [vmem:[#allocation5 + $0x540] sm:$0xff]
    %v287 = vld [vmem:[#allocation5 + $0x548] sm:$0xff]
    %v288 = vld [vmem:[#allocation5 + $0x550] sm:$0xff]
    %v289 = vld [vmem:[#allocation5 + $0x558] sm:$0xff]
    %v290 = vld [vmem:[#allocation5 + $0x560] sm:$0xff]
    %v291 = vld [vmem:[#allocation5 + $0x568] sm:$0xff]
    %v292 = vld [vmem:[#allocation5 + $0x570] sm:$0xff]
    %v293 = vld [vmem:[#allocation5 + $0x578] sm:$0xff]
    %v294 = vld [vmem:[#allocation5 + $0x580] sm:$0xff]
    %v295 = vld [vmem:[#allocation5 + $0x588] sm:$0xff]
    %v296 = vld [vmem:[#allocation5 + $0x590] sm:$0xff]
    %v297 = vld [vmem:[#allocation5 + $0x598] sm:$0xff]
    %v298 = vld [vmem:[#allocation5 + $0x5a0] sm:$0xff]
    %v299 = vld [vmem:[#allocation5 + $0x5a8] sm:$0xff]
    %v300 = vld [vmem:[#allocation5 + $0x5b0] sm:$0xff]
    %v301 = vld [vmem:[#allocation5 + $0x5b8] sm:$0xff]
    %v302 = vld [vmem:[#allocation5 + $0x5c0] sm:$0xff]
    %v303 = vld [vmem:[#allocation5 + $0x5c8] sm:$0xff]
    %v304 = vld [vmem:[#allocation5 + $0x5d0] sm:$0xff]
    %v305 = vld [vmem:[#allocation5 + $0x5d8] sm:$0xff]
    %v306 = vld [vmem:[#allocation5 + $0x5e0] sm:$0xff]
    %v307 = vld [vmem:[#allocation5 + $0x5e8] sm:$0xff]
    %v308 = vld [vmem:[#allocation5 + $0x5f0] sm:$0xff]
    %v309 = vld [vmem:[#allocation5 + $0x5f8] sm:$0xff]
    %v310 = vld [vmem:[#allocation5 + $0x600] sm:$0xff]
    %v311 = vld [vmem:[#allocation5 + $0x608] sm:$0xff]
    %v312 = vld [vmem:[#allocation5 + $0x610] sm:$0xff]
    %v313 = vld [vmem:[#allocation5 + $0x618] sm:$0xff]
    %v314 = vld [vmem:[#allocation5 + $0x620] sm:$0xff]
    %v315 = vld [vmem:[#allocation5 + $0x628] sm:$0xff]
    %v316 = vld [vmem:[#allocation5 + $0x630] sm:$0xff]
    %v317 = vld [vmem:[#allocation5 + $0x638] sm:$0xff]
    %v318 = vld [vmem:[#allocation5 + $0x640] sm:$0xff]
    %v319 = vld [vmem:[#allocation5 + $0x648] sm:$0xff]
    %v320 = vld [vmem:[#allocation5 + $0x650] sm:$0xff]
    %v321 = vld [vmem:[#allocation5 + $0x658] sm:$0xff]
    %v322 = vld [vmem:[#allocation5 + $0x660] sm:$0xff]
    %v323 = vld [vmem:[#allocation5 + $0x668] sm:$0xff]
    %v324 = vld [vmem:[#allocation5 + $0x670] sm:$0xff]
    %v325 = vld [vmem:[#allocation5 + $0x678] sm:$0xff]
    %v326 = vld [vmem:[#allocation5 + $0x680] sm:$0xff]
    %v327 = vld [vmem:[#allocation5 + $0x688] sm:$0xff]
    %v328 = vld [vmem:[#allocation5 + $0x690] sm:$0xff]
    %v329 = vld [vmem:[#allocation5 + $0x698] sm:$0xff]
    %v330 = vld [vmem:[#allocation5 + $0x6a0] sm:$0xff]
    %v331 = vld [vmem:[#allocation5 + $0x6a8] sm:$0xff]
    %v332 = vld [vmem:[#allocation5 + $0x6b0] sm:$0xff]
    %v333 = vld [vmem:[#allocation5 + $0x6b8] sm:$0xff]
    %v334 = vld [vmem:[#allocation5 + $0x6c0] sm:$0xff]
    %v335 = vld [vmem:[#allocation5 + $0x6c8] sm:$0xff]
    %v336 = vld [vmem:[#allocation5 + $0x6d0] sm:$0xff]
    %v337 = vld [vmem:[#allocation5 + $0x6d8] sm:$0xff]
    %v338 = vld [vmem:[#allocation5 + $0x6e0] sm:$0xff]
    %v339 = vld [vmem:[#allocation5 + $0x6e8] sm:$0xff]
    %v340 = vld [vmem:[#allocation5 + $0x6f0] sm:$0xff]
    %v341 = vld [vmem:[#allocation5 + $0x6f8] sm:$0xff]
    %v342 = vld [vmem:[%s2] sm:$0xf]
    %v344 = vlaneseq
    %v345 = vshrl.u32 %v344, 7
    %v346 = vsub.s32 0, %v345
    %v347 = vrot.slane %v342, %v346
    %v348 = vlaneseq
    %v349 = vshrl.u32 %v348, 7
    %v350 = vsub.s32 1, %v349
    %v351 = vrot.slane %v342, %v350
    %v352 = vlaneseq
    %v353 = vshrl.u32 %v352, 7
    %v354 = vsub.s32 2, %v353
    %v355 = vrot.slane %v342, %v354
    %v356 = vlaneseq
    %v357 = vshrl.u32 %v356, 7
    %v358 = vsub.s32 3, %v357
    %v359 = vrot.slane %v342, %v358
    %v392 = vunpack.c.l.b16 %v90
    %v393 = vunpack.c.h.b16 %v90
    %v394 = vunpack.c.l.b16 %v91
    %v395 = vunpack.c.h.b16 %v91
    %v396 = vunpack.c.l.b16 %v92
    %v397 = vunpack.c.h.b16 %v92
    %v398 = vunpack.c.l.b16 %v93
    %v399 = vunpack.c.l.b16 %v94
    %v400 = vunpack.c.h.b16 %v94
    %v401 = vunpack.c.l.b16 %v95
    %v402 = vunpack.c.h.b16 %v95
    %v403 = vunpack.c.l.b16 %v96
    %v404 = vunpack.c.h.b16 %v96
    %v405 = vunpack.c.l.b16 %v97
    %v406 = vunpack.c.l.b16 %v98
    %v407 = vunpack.c.h.b16 %v98
    %v408 = vunpack.c.l.b16 %v99
    %v409 = vunpack.c.h.b16 %v99
    %v410 = vunpack.c.l.b16 %v100
    %v411 = vunpack.c.h.b16 %v100
    %v412 = vunpack.c.l.b16 %v101
    %v413 = vunpack.c.l.b16 %v102
    %v414 = vunpack.c.h.b16 %v102
    %v415 = vunpack.c.l.b16 %v103
    %v416 = vunpack.c.h.b16 %v103
    %v417 = vunpack.c.l.b16 %v104
    %v418 = vunpack.c.h.b16 %v104
    %v419 = vunpack.c.l.b16 %v105
    %v420 = vunpack.c.l.b16 %v106
    %v421 = vunpack.c.h.b16 %v106
    %v422 = vunpack.c.l.b16 %v107
    %v423 = vunpack.c.h.b16 %v107
    %v424 = vunpack.c.l.b16 %v108
    %v425 = vunpack.c.h.b16 %v108
    %v426 = vunpack.c.l.b16 %v109
    %v427 = vunpack.c.l.b16 %v110
    %v428 = vunpack.c.h.b16 %v110
    %v429 = vunpack.c.l.b16 %v111
    %v430 = vunpack.c.h.b16 %v111
    %v431 = vunpack.c.l.b16 %v112
    %v432 = vunpack.c.h.b16 %v112
    %v433 = vunpack.c.l.b16 %v113
    %v434 = vunpack.c.l.b16 %v114
    %v435 = vunpack.c.h.b16 %v114
    %v436 = vunpack.c.l.b16 %v115
    %v437 = vunpack.c.h.b16 %v115
    %v438 = vunpack.c.l.b16 %v116
    %v439 = vunpack.c.h.b16 %v116
    %v440 = vunpack.c.l.b16 %v117
    %v441 = vpack.c.b16 %v399, %v392
    %v442 = vpack.c.b16 %v400, %v393
    %v443 = vpack.c.b16 %v401, %v394
    %v444 = vpack.c.b16 %v402, %v395
    %v445 = vpack.c.b16 %v403, %v396
    %v446 = vpack.c.b16 %v404, %v397
    %v447 = vpack.c.b16 %v405, %v398
    %v448 = vpack.c.b16 %v413, %v406
    %v449 = vpack.c.b16 %v414, %v407
    %v450 = vpack.c.b16 %v415, %v408
    %v451 = vpack.c.b16 %v416, %v409
    %v452 = vpack.c.b16 %v417, %v410
    %v453 = vpack.c.b16 %v418, %v411
    %v454 = vpack.c.b16 %v419, %v412
    %v455 = vpack.c.b16 %v427, %v420
    %v456 = vpack.c.b16 %v428, %v421
    %v457 = vpack.c.b16 %v429, %v422
    %v458 = vpack.c.b16 %v430, %v423
    %v459 = vpack.c.b16 %v431, %v424
    %v460 = vpack.c.b16 %v432, %v425
    %v461 = vpack.c.b16 %v433, %v426
    %v462 = vpack.c.b16 %v434, %v434
    %v463 = vpack.c.b16 %v435, %v435
    %v464 = vpack.c.b16 %v436, %v436
    %v465 = vpack.c.b16 %v437, %v437
    %v466 = vpack.c.b16 %v438, %v438
    %v467 = vpack.c.b16 %v439, %v439
    %v468 = vpack.c.b16 %v440, %v440
    %v721 = vunpack.c.l.b16 %v118
    %v722 = vunpack.c.h.b16 %v118
    %v723 = vunpack.c.l.b16 %v119
    %v724 = vunpack.c.h.b16 %v119
    %v725 = vunpack.c.l.b16 %v120
    %v726 = vunpack.c.h.b16 %v120
    %v727 = vunpack.c.l.b16 %v121
    %v728 = vunpack.c.h.b16 %v121
    %v729 = vunpack.c.l.b16 %v122
    %v730 = vunpack.c.h.b16 %v122
    %v731 = vunpack.c.l.b16 %v123
    %v732 = vunpack.c.h.b16 %v123
    %v733 = vunpack.c.l.b16 %v124
    %v734 = vunpack.c.h.b16 %v124
    %v735 = vunpack.c.l.b16 %v125
    %v736 = vunpack.c.h.b16 %v125
    %v737 = vunpack.c.l.b16 %v126
    %v738 = vunpack.c.h.b16 %v126
    %v739 = vunpack.c.l.b16 %v127
    %v740 = vunpack.c.h.b16 %v127
    %v741 = vunpack.c.l.b16 %v128
    %v742 = vunpack.c.h.b16 %v128
    %v743 = vunpack.c.l.b16 %v129
    %v744 = vunpack.c.h.b16 %v129
    %v745 = vunpack.c.l.b16 %v130
    %v746 = vunpack.c.h.b16 %v130
    %v747 = vunpack.c.l.b16 %v131
    %v748 = vunpack.c.h.b16 %v131
    %v749 = vunpack.c.l.b16 %v132
    %v750 = vunpack.c.h.b16 %v132
    %v751 = vunpack.c.l.b16 %v133
    %v752 = vunpack.c.h.b16 %v133
    %v753 = vunpack.c.l.b16 %v134
    %v754 = vunpack.c.h.b16 %v134
    %v755 = vunpack.c.l.b16 %v135
    %v756 = vunpack.c.h.b16 %v135
    %v757 = vunpack.c.l.b16 %v136
    %v758 = vunpack.c.h.b16 %v136
    %v759 = vunpack.c.l.b16 %v137
    %v760 = vunpack.c.h.b16 %v137
    %v761 = vunpack.c.l.b16 %v138
    %v762 = vunpack.c.h.b16 %v138
    %v763 = vunpack.c.l.b16 %v139
    %v764 = vunpack.c.h.b16 %v139
    %v765 = vunpack.c.l.b16 %v140
    %v766 = vunpack.c.h.b16 %v140
    %v767 = vunpack.c.l.b16 %v141
    %v768 = vunpack.c.h.b16 %v141
    %v769 = vunpack.c.l.b16 %v142
    %v770 = vunpack.c.h.b16 %v142
    %v771 = vunpack.c.l.b16 %v143
    %v772 = vunpack.c.h.b16 %v143
    %v773 = vunpack.c.l.b16 %v144
    %v774 = vunpack.c.h.b16 %v144
    %v775 = vunpack.c.l.b16 %v145
    %v776 = vunpack.c.h.b16 %v145
    %v777 = vunpack.c.l.b16 %v146
    %v778 = vunpack.c.h.b16 %v146
    %v779 = vunpack.c.l.b16 %v147
    %v780 = vunpack.c.h.b16 %v147
    %v781 = vunpack.c.l.b16 %v148
    %v782 = vunpack.c.h.b16 %v148
    %v783 = vunpack.c.l.b16 %v149
    %v784 = vunpack.c.h.b16 %v149
    %v785 = vunpack.c.l.b16 %v150
    %v786 = vunpack.c.h.b16 %v150
    %v787 = vunpack.c.l.b16 %v151
    %v788 = vunpack.c.h.b16 %v151
    %v789 = vunpack.c.l.b16 %v152
    %v790 = vunpack.c.h.b16 %v152
    %v791 = vunpack.c.l.b16 %v153
    %v792 = vunpack.c.h.b16 %v153
    %v793 = vunpack.c.l.b16 %v154
    %v794 = vunpack.c.h.b16 %v154
    %v795 = vunpack.c.l.b16 %v155
    %v796 = vunpack.c.h.b16 %v155
    %v797 = vunpack.c.l.b16 %v156
    %v798 = vunpack.c.h.b16 %v156
    %v799 = vunpack.c.l.b16 %v157
    %v800 = vunpack.c.h.b16 %v157
    %v801 = vunpack.c.l.b16 %v158
    %v802 = vunpack.c.h.b16 %v158
    %v803 = vunpack.c.l.b16 %v159
    %v804 = vunpack.c.h.b16 %v159
    %v805 = vunpack.c.l.b16 %v160
    %v806 = vunpack.c.h.b16 %v160
    %v807 = vunpack.c.l.b16 %v161
    %v808 = vunpack.c.h.b16 %v161
    %v809 = vunpack.c.l.b16 %v162
    %v810 = vunpack.c.h.b16 %v162
    %v811 = vunpack.c.l.b16 %v163
    %v812 = vunpack.c.h.b16 %v163
    %v813 = vunpack.c.l.b16 %v164
    %v814 = vunpack.c.h.b16 %v164
    %v815 = vunpack.c.l.b16 %v165
    %v816 = vunpack.c.h.b16 %v165
    %v817 = vunpack.c.l.b16 %v166
    %v818 = vunpack.c.h.b16 %v166
    %v819 = vunpack.c.l.b16 %v167
    %v820 = vunpack.c.h.b16 %v167
    %v821 = vunpack.c.l.b16 %v168
    %v822 = vunpack.c.h.b16 %v168
    %v823 = vunpack.c.l.b16 %v169
    %v824 = vunpack.c.h.b16 %v169
    %v825 = vunpack.c.l.b16 %v170
    %v826 = vunpack.c.h.b16 %v170
    %v827 = vunpack.c.l.b16 %v171
    %v828 = vunpack.c.h.b16 %v171
    %v829 = vunpack.c.l.b16 %v172
    %v830 = vunpack.c.h.b16 %v172
    %v831 = vunpack.c.l.b16 %v173
    %v832 = vunpack.c.h.b16 %v173
    %v833 = vunpack.c.l.b16 %v174
    %v834 = vunpack.c.h.b16 %v174
    %v835 = vunpack.c.l.b16 %v175
    %v836 = vunpack.c.h.b16 %v175
    %v837 = vunpack.c.l.b16 %v176
    %v838 = vunpack.c.h.b16 %v176
    %v839 = vunpack.c.l.b16 %v177
    %v840 = vunpack.c.h.b16 %v177
    %v841 = vunpack.c.l.b16 %v178
    %v842 = vunpack.c.h.b16 %v178
    %v843 = vunpack.c.l.b16 %v179
    %v844 = vunpack.c.h.b16 %v179
    %v845 = vunpack.c.l.b16 %v180
    %v846 = vunpack.c.h.b16 %v180
    %v847 = vunpack.c.l.b16 %v181
    %v848 = vunpack.c.h.b16 %v181
    %v849 = vunpack.c.l.b16 %v182
    %v850 = vunpack.c.h.b16 %v182
    %v851 = vunpack.c.l.b16 %v183
    %v852 = vunpack.c.h.b16 %v183
    %v853 = vunpack.c.l.b16 %v184
    %v854 = vunpack.c.h.b16 %v184
    %v855 = vunpack.c.l.b16 %v185
    %v856 = vunpack.c.h.b16 %v185
    %v857 = vunpack.c.l.b16 %v186
    %v858 = vunpack.c.h.b16 %v186
    %v859 = vunpack.c.l.b16 %v187
    %v860 = vunpack.c.h.b16 %v187
    %v861 = vunpack.c.l.b16 %v188
    %v862 = vunpack.c.h.b16 %v188
    %v863 = vunpack.c.l.b16 %v189
    %v864 = vunpack.c.h.b16 %v189
    %v865 = vunpack.c.l.b16 %v190
    %v866 = vunpack.c.h.b16 %v190
    %v867 = vunpack.c.l.b16 %v191
    %v868 = vunpack.c.h.b16 %v191
    %v869 = vunpack.c.l.b16 %v192
    %v870 = vunpack.c.h.b16 %v192
    %v871 = vunpack.c.l.b16 %v193
    %v872 = vunpack.c.h.b16 %v193
    %v873 = vunpack.c.l.b16 %v194
    %v874 = vunpack.c.h.b16 %v194
    %v875 = vunpack.c.l.b16 %v195
    %v876 = vunpack.c.h.b16 %v195
    %v877 = vunpack.c.l.b16 %v196
    %v878 = vunpack.c.h.b16 %v196
    %v879 = vunpack.c.l.b16 %v197
    %v880 = vunpack.c.h.b16 %v197
    %v881 = vunpack.c.l.b16 %v198
    %v882 = vunpack.c.h.b16 %v198
    %v883 = vunpack.c.l.b16 %v199
    %v884 = vunpack.c.h.b16 %v199
    %v885 = vunpack.c.l.b16 %v200
    %v886 = vunpack.c.h.b16 %v200
    %v887 = vunpack.c.l.b16 %v201
    %v888 = vunpack.c.h.b16 %v201
    %v889 = vunpack.c.l.b16 %v202
    %v890 = vunpack.c.h.b16 %v202
    %v891 = vunpack.c.l.b16 %v203
    %v892 = vunpack.c.h.b16 %v203
    %v893 = vunpack.c.l.b16 %v204
    %v894 = vunpack.c.h.b16 %v204
    %v895 = vunpack.c.l.b16 %v205
    %v896 = vunpack.c.h.b16 %v205
    %v897 = vunpack.c.l.b16 %v206
    %v898 = vunpack.c.h.b16 %v206
    %v899 = vunpack.c.l.b16 %v207
    %v900 = vunpack.c.h.b16 %v207
    %v901 = vunpack.c.l.b16 %v208
    %v902 = vunpack.c.h.b16 %v208
    %v903 = vunpack.c.l.b16 %v209
    %v904 = vunpack.c.h.b16 %v209
    %v905 = vunpack.c.l.b16 %v210
    %v906 = vunpack.c.h.b16 %v210
    %v907 = vunpack.c.l.b16 %v211
    %v908 = vunpack.c.h.b16 %v211
    %v909 = vunpack.c.l.b16 %v212
    %v910 = vunpack.c.h.b16 %v212
    %v911 = vunpack.c.l.b16 %v213
    %v912 = vunpack.c.h.b16 %v213
    %v913 = vunpack.c.l.b16 %v214
    %v914 = vunpack.c.h.b16 %v214
    %v915 = vunpack.c.l.b16 %v215
    %v916 = vunpack.c.h.b16 %v215
    %v917 = vunpack.c.l.b16 %v216
    %v918 = vunpack.c.h.b16 %v216
    %v919 = vunpack.c.l.b16 %v217
    %v920 = vunpack.c.h.b16 %v217
    %v921 = vunpack.c.l.b16 %v218
    %v922 = vunpack.c.h.b16 %v218
    %v923 = vunpack.c.l.b16 %v219
    %v924 = vunpack.c.h.b16 %v219
    %v925 = vunpack.c.l.b16 %v220
    %v926 = vunpack.c.h.b16 %v220
    %v927 = vunpack.c.l.b16 %v221
    %v928 = vunpack.c.h.b16 %v221
    %v929 = vunpack.c.l.b16 %v222
    %v930 = vunpack.c.h.b16 %v222
    %v931 = vunpack.c.l.b16 %v223
    %v932 = vunpack.c.h.b16 %v223
    %v933 = vunpack.c.l.b16 %v224
    %v934 = vunpack.c.h.b16 %v224
    %v935 = vunpack.c.l.b16 %v225
    %v936 = vunpack.c.h.b16 %v225
    %v937 = vunpack.c.l.b16 %v226
    %v938 = vunpack.c.h.b16 %v226
    %v939 = vunpack.c.l.b16 %v227
    %v940 = vunpack.c.h.b16 %v227
    %v941 = vunpack.c.l.b16 %v228
    %v942 = vunpack.c.h.b16 %v228
    %v943 = vunpack.c.l.b16 %v229
    %v944 = vunpack.c.h.b16 %v229
    %v945 = vunpack.c.l.b16 %v230
    %v946 = vunpack.c.h.b16 %v230
    %v947 = vunpack.c.l.b16 %v231
    %v948 = vunpack.c.h.b16 %v231
    %v949 = vunpack.c.l.b16 %v232
    %v950 = vunpack.c.h.b16 %v232
    %v951 = vunpack.c.l.b16 %v233
    %v952 = vunpack.c.h.b16 %v233
    %v953 = vunpack.c.l.b16 %v234
    %v954 = vunpack.c.h.b16 %v234
    %v955 = vunpack.c.l.b16 %v235
    %v956 = vunpack.c.h.b16 %v235
    %v957 = vunpack.c.l.b16 %v236
    %v958 = vunpack.c.h.b16 %v236
    %v959 = vunpack.c.l.b16 %v237
    %v960 = vunpack.c.h.b16 %v237
    %v961 = vunpack.c.l.b16 %v238
    %v962 = vunpack.c.h.b16 %v238
    %v963 = vunpack.c.l.b16 %v239
    %v964 = vunpack.c.h.b16 %v239
    %v965 = vunpack.c.l.b16 %v240
    %v966 = vunpack.c.h.b16 %v240
    %v967 = vunpack.c.l.b16 %v241
    %v968 = vunpack.c.h.b16 %v241
    %v969 = vunpack.c.l.b16 %v242
    %v970 = vunpack.c.h.b16 %v242
    %v971 = vunpack.c.l.b16 %v243
    %v972 = vunpack.c.h.b16 %v243
    %v973 = vunpack.c.l.b16 %v244
    %v974 = vunpack.c.h.b16 %v244
    %v975 = vunpack.c.l.b16 %v245
    %v976 = vunpack.c.h.b16 %v245
    %v977 = vunpack.c.l.b16 %v246
    %v978 = vunpack.c.h.b16 %v246
    %v979 = vunpack.c.l.b16 %v247
    %v980 = vunpack.c.h.b16 %v247
    %v981 = vunpack.c.l.b16 %v248
    %v982 = vunpack.c.h.b16 %v248
    %v983 = vunpack.c.l.b16 %v249
    %v984 = vunpack.c.h.b16 %v249
    %v985 = vunpack.c.l.b16 %v250
    %v986 = vunpack.c.h.b16 %v250
    %v987 = vunpack.c.l.b16 %v251
    %v988 = vunpack.c.h.b16 %v251
    %v989 = vunpack.c.l.b16 %v252
    %v990 = vunpack.c.h.b16 %v252
    %v991 = vunpack.c.l.b16 %v253
    %v992 = vunpack.c.h.b16 %v253
    %v993 = vunpack.c.l.b16 %v254
    %v994 = vunpack.c.h.b16 %v254
    %v995 = vunpack.c.l.b16 %v255
    %v996 = vunpack.c.h.b16 %v255
    %v997 = vunpack.c.l.b16 %v256
    %v998 = vunpack.c.h.b16 %v256
    %v999 = vunpack.c.l.b16 %v257
    %v1000 = vunpack.c.h.b16 %v257
    %v1001 = vunpack.c.l.b16 %v258
    %v1002 = vunpack.c.h.b16 %v258
    %v1003 = vunpack.c.l.b16 %v259
    %v1004 = vunpack.c.h.b16 %v259
    %v1005 = vunpack.c.l.b16 %v260
    %v1006 = vunpack.c.h.b16 %v260
    %v1007 = vunpack.c.l.b16 %v261
    %v1008 = vunpack.c.h.b16 %v261
    %v1009 = vunpack.c.l.b16 %v262
    %v1010 = vunpack.c.h.b16 %v262
    %v1011 = vunpack.c.l.b16 %v263
    %v1012 = vunpack.c.h.b16 %v263
    %v1013 = vunpack.c.l.b16 %v264
    %v1014 = vunpack.c.h.b16 %v264
    %v1015 = vunpack.c.l.b16 %v265
    %v1016 = vunpack.c.h.b16 %v265
    %v1017 = vunpack.c.l.b16 %v266
    %v1018 = vunpack.c.h.b16 %v266
    %v1019 = vunpack.c.l.b16 %v267
    %v1020 = vunpack.c.h.b16 %v267
    %v1021 = vunpack.c.l.b16 %v268
    %v1022 = vunpack.c.h.b16 %v268
    %v1023 = vunpack.c.l.b16 %v269
    %v1024 = vunpack.c.h.b16 %v269
    %v1025 = vunpack.c.l.b16 %v270
    %v1026 = vunpack.c.h.b16 %v270
    %v1027 = vunpack.c.l.b16 %v271
    %v1028 = vunpack.c.h.b16 %v271
    %v1029 = vunpack.c.l.b16 %v272
    %v1030 = vunpack.c.h.b16 %v272
    %v1031 = vunpack.c.l.b16 %v273
    %v1032 = vunpack.c.h.b16 %v273
    %v1033 = vunpack.c.l.b16 %v274
    %v1034 = vunpack.c.h.b16 %v274
    %v1035 = vunpack.c.l.b16 %v275
    %v1036 = vunpack.c.h.b16 %v275
    %v1037 = vunpack.c.l.b16 %v276
    %v1038 = vunpack.c.h.b16 %v276
    %v1039 = vunpack.c.l.b16 %v277
    %v1040 = vunpack.c.h.b16 %v277
    %v1041 = vunpack.c.l.b16 %v278
    %v1042 = vunpack.c.h.b16 %v278
    %v1043 = vunpack.c.l.b16 %v279
    %v1044 = vunpack.c.h.b16 %v279
    %v1045 = vunpack.c.l.b16 %v280
    %v1046 = vunpack.c.h.b16 %v280
    %v1047 = vunpack.c.l.b16 %v281
    %v1048 = vunpack.c.h.b16 %v281
    %v1049 = vunpack.c.l.b16 %v282
    %v1050 = vunpack.c.h.b16 %v282
    %v1051 = vunpack.c.l.b16 %v283
    %v1052 = vunpack.c.h.b16 %v283
    %v1053 = vunpack.c.l.b16 %v284
    %v1054 = vunpack.c.h.b16 %v284
    %v1055 = vunpack.c.l.b16 %v285
    %v1056 = vunpack.c.h.b16 %v285
    %v1057 = vunpack.c.l.b16 %v286
    %v1058 = vunpack.c.h.b16 %v286
    %v1059 = vunpack.c.l.b16 %v287
    %v1060 = vunpack.c.h.b16 %v287
    %v1061 = vunpack.c.l.b16 %v288
    %v1062 = vunpack.c.h.b16 %v288
    %v1063 = vunpack.c.l.b16 %v289
    %v1064 = vunpack.c.h.b16 %v289
    %v1065 = vunpack.c.l.b16 %v290
    %v1066 = vunpack.c.h.b16 %v290
    %v1067 = vunpack.c.l.b16 %v291
    %v1068 = vunpack.c.h.b16 %v291
    %v1069 = vunpack.c.l.b16 %v292
    %v1070 = vunpack.c.h.b16 %v292
    %v1071 = vunpack.c.l.b16 %v293
    %v1072 = vunpack.c.h.b16 %v293
    %v1073 = vunpack.c.l.b16 %v294
    %v1074 = vunpack.c.h.b16 %v294
    %v1075 = vunpack.c.l.b16 %v295
    %v1076 = vunpack.c.h.b16 %v295
    %v1077 = vunpack.c.l.b16 %v296
    %v1078 = vunpack.c.h.b16 %v296
    %v1079 = vunpack.c.l.b16 %v297
    %v1080 = vunpack.c.h.b16 %v297
    %v1081 = vunpack.c.l.b16 %v298
    %v1082 = vunpack.c.h.b16 %v298
    %v1083 = vunpack.c.l.b16 %v299
    %v1084 = vunpack.c.h.b16 %v299
    %v1085 = vunpack.c.l.b16 %v300
    %v1086 = vunpack.c.h.b16 %v300
    %v1087 = vunpack.c.l.b16 %v301
    %v1088 = vunpack.c.h.b16 %v301
    %v1089 = vunpack.c.l.b16 %v302
    %v1090 = vunpack.c.h.b16 %v302
    %v1091 = vunpack.c.l.b16 %v303
    %v1092 = vunpack.c.h.b16 %v303
    %v1093 = vunpack.c.l.b16 %v304
    %v1094 = vunpack.c.h.b16 %v304
    %v1095 = vunpack.c.l.b16 %v305
    %v1096 = vunpack.c.h.b16 %v305
    %v1097 = vunpack.c.l.b16 %v306
    %v1098 = vunpack.c.h.b16 %v306
    %v1099 = vunpack.c.l.b16 %v307
    %v1100 = vunpack.c.h.b16 %v307
    %v1101 = vunpack.c.l.b16 %v308
    %v1102 = vunpack.c.h.b16 %v308
    %v1103 = vunpack.c.l.b16 %v309
    %v1104 = vunpack.c.h.b16 %v309
    %v1105 = vunpack.c.l.b16 %v310
    %v1106 = vunpack.c.h.b16 %v310
    %v1107 = vunpack.c.l.b16 %v311
    %v1108 = vunpack.c.h.b16 %v311
    %v1109 = vunpack.c.l.b16 %v312
    %v1110 = vunpack.c.h.b16 %v312
    %v1111 = vunpack.c.l.b16 %v313
    %v1112 = vunpack.c.h.b16 %v313
    %v1113 = vunpack.c.l.b16 %v314
    %v1114 = vunpack.c.h.b16 %v314
    %v1115 = vunpack.c.l.b16 %v315
    %v1116 = vunpack.c.h.b16 %v315
    %v1117 = vunpack.c.l.b16 %v316
    %v1118 = vunpack.c.h.b16 %v316
    %v1119 = vunpack.c.l.b16 %v317
    %v1120 = vunpack.c.h.b16 %v317
    %v1121 = vunpack.c.l.b16 %v318
    %v1122 = vunpack.c.h.b16 %v318
    %v1123 = vunpack.c.l.b16 %v319
    %v1124 = vunpack.c.h.b16 %v319
    %v1125 = vunpack.c.l.b16 %v320
    %v1126 = vunpack.c.h.b16 %v320
    %v1127 = vunpack.c.l.b16 %v321
    %v1128 = vunpack.c.h.b16 %v321
    %v1129 = vunpack.c.l.b16 %v322
    %v1130 = vunpack.c.h.b16 %v322
    %v1131 = vunpack.c.l.b16 %v323
    %v1132 = vunpack.c.h.b16 %v323
    %v1133 = vunpack.c.l.b16 %v324
    %v1134 = vunpack.c.h.b16 %v324
    %v1135 = vunpack.c.l.b16 %v325
    %v1136 = vunpack.c.h.b16 %v325
    %v1137 = vunpack.c.l.b16 %v326
    %v1138 = vunpack.c.h.b16 %v326
    %v1139 = vunpack.c.l.b16 %v327
    %v1140 = vunpack.c.h.b16 %v327
    %v1141 = vunpack.c.l.b16 %v328
    %v1142 = vunpack.c.h.b16 %v328
    %v1143 = vunpack.c.l.b16 %v329
    %v1144 = vunpack.c.h.b16 %v329
    %v1145 = vunpack.c.l.b16 %v330
    %v1146 = vunpack.c.h.b16 %v330
    %v1147 = vunpack.c.l.b16 %v331
    %v1148 = vunpack.c.h.b16 %v331
    %v1149 = vunpack.c.l.b16 %v332
    %v1150 = vunpack.c.h.b16 %v332
    %v1151 = vunpack.c.l.b16 %v333
    %v1152 = vunpack.c.h.b16 %v333
    %v1153 = vunpack.c.l.b16 %v334
    %v1154 = vunpack.c.h.b16 %v334
    %v1155 = vunpack.c.l.b16 %v335
    %v1156 = vunpack.c.h.b16 %v335
    %v1157 = vunpack.c.l.b16 %v336
    %v1158 = vunpack.c.h.b16 %v336
    %v1159 = vunpack.c.l.b16 %v337
    %v1160 = vunpack.c.h.b16 %v337
    %v1161 = vunpack.c.l.b16 %v338
    %v1162 = vunpack.c.h.b16 %v338
    %v1163 = vunpack.c.l.b16 %v339
    %v1164 = vunpack.c.h.b16 %v339
    %v1165 = vunpack.c.l.b16 %v340
    %v1166 = vunpack.c.h.b16 %v340
    %v1167 = vunpack.c.l.b16 %v341
    %v1168 = vunpack.c.h.b16 %v341
    %v1169 = vpack.c.b16 %v725, %v721
    %v1170 = vpack.c.b16 %v726, %v722
    %v1171 = vpack.c.b16 %v727, %v723
    %v1172 = vpack.c.b16 %v728, %v724
    %v1173 = vpack.c.b16 %v733, %v729
    %v1174 = vpack.c.b16 %v734, %v730
    %v1175 = vpack.c.b16 %v735, %v731
    %v1176 = vpack.c.b16 %v736, %v732
    %v1177 = vpack.c.b16 %v741, %v737
    %v1178 = vpack.c.b16 %v742, %v738
    %v1179 = vpack.c.b16 %v743, %v739
    %v1180 = vpack.c.b16 %v744, %v740
    %v1181 = vpack.c.b16 %v749, %v745
    %v1182 = vpack.c.b16 %v750, %v746
    %v1183 = vpack.c.b16 %v751, %v747
    %v1184 = vpack.c.b16 %v752, %v748
    %v1185 = vpack.c.b16 %v757, %v753
    %v1186 = vpack.c.b16 %v758, %v754
    %v1187 = vpack.c.b16 %v759, %v755
    %v1188 = vpack.c.b16 %v760, %v756
    %v1189 = vpack.c.b16 %v765, %v761
    %v1190 = vpack.c.b16 %v766, %v762
    %v1191 = vpack.c.b16 %v767, %v763
    %v1192 = vpack.c.b16 %v768, %v764
    %v1193 = vpack.c.b16 %v773, %v769
    %v1194 = vpack.c.b16 %v774, %v770
    %v1195 = vpack.c.b16 %v775, %v771
    %v1196 = vpack.c.b16 %v776, %v772
    %v1197 = vpack.c.b16 %v781, %v777
    %v1198 = vpack.c.b16 %v782, %v778
    %v1199 = vpack.c.b16 %v783, %v779
    %v1200 = vpack.c.b16 %v784, %v780
    %v1201 = vpack.c.b16 %v789, %v785
    %v1202 = vpack.c.b16 %v790, %v786
    %v1203 = vpack.c.b16 %v791, %v787
    %v1204 = vpack.c.b16 %v792, %v788
    %v1205 = vpack.c.b16 %v797, %v793
    %v1206 = vpack.c.b16 %v798, %v794
    %v1207 = vpack.c.b16 %v799, %v795
    %v1208 = vpack.c.b16 %v800, %v796
    %v1209 = vpack.c.b16 %v805, %v801
    %v1210 = vpack.c.b16 %v806, %v802
    %v1211 = vpack.c.b16 %v807, %v803
    %v1212 = vpack.c.b16 %v808, %v804
    %v1213 = vpack.c.b16 %v813, %v809
    %v1214 = vpack.c.b16 %v814, %v810
    %v1215 = vpack.c.b16 %v815, %v811
    %v1216 = vpack.c.b16 %v816, %v812
    %v1217 = vpack.c.b16 %v821, %v817
    %v1218 = vpack.c.b16 %v822, %v818
    %v1219 = vpack.c.b16 %v823, %v819
    %v1220 = vpack.c.b16 %v824, %v820
    %v1221 = vpack.c.b16 %v829, %v825
    %v1222 = vpack.c.b16 %v830, %v826
    %v1223 = vpack.c.b16 %v831, %v827
    %v1224 = vpack.c.b16 %v832, %v828
    %v1225 = vpack.c.b16 %v837, %v833
    %v1226 = vpack.c.b16 %v838, %v834
    %v1227 = vpack.c.b16 %v839, %v835
    %v1228 = vpack.c.b16 %v840, %v836
    %v1229 = vpack.c.b16 %v845, %v841
    %v1230 = vpack.c.b16 %v846, %v842
    %v1231 = vpack.c.b16 %v847, %v843
    %v1232 = vpack.c.b16 %v848, %v844
    %v1233 = vpack.c.b16 %v853, %v849
    %v1234 = vpack.c.b16 %v854, %v850
    %v1235 = vpack.c.b16 %v855, %v851
    %v1236 = vpack.c.b16 %v856, %v852
    %v1237 = vpack.c.b16 %v861, %v857
    %v1238 = vpack.c.b16 %v862, %v858
    %v1239 = vpack.c.b16 %v863, %v859
    %v1240 = vpack.c.b16 %v864, %v860
    %v1241 = vpack.c.b16 %v869, %v865
    %v1242 = vpack.c.b16 %v870, %v866
    %v1243 = vpack.c.b16 %v871, %v867
    %v1244 = vpack.c.b16 %v872, %v868
    %v1245 = vpack.c.b16 %v877, %v873
    %v1246 = vpack.c.b16 %v878, %v874
    %v1247 = vpack.c.b16 %v879, %v875
    %v1248 = vpack.c.b16 %v880, %v876
    %v1249 = vpack.c.b16 %v885, %v881
    %v1250 = vpack.c.b16 %v886, %v882
    %v1251 = vpack.c.b16 %v887, %v883
    %v1252 = vpack.c.b16 %v888, %v884
    %v1253 = vpack.c.b16 %v893, %v889
    %v1254 = vpack.c.b16 %v894, %v890
    %v1255 = vpack.c.b16 %v895, %v891
    %v1256 = vpack.c.b16 %v896, %v892
    %v1257 = vpack.c.b16 %v901, %v897
    %v1258 = vpack.c.b16 %v902, %v898
    %v1259 = vpack.c.b16 %v903, %v899
    %v1260 = vpack.c.b16 %v904, %v900
    %v1261 = vpack.c.b16 %v909, %v905
    %v1262 = vpack.c.b16 %v910, %v906
    %v1263 = vpack.c.b16 %v911, %v907
    %v1264 = vpack.c.b16 %v912, %v908
    %v1265 = vpack.c.b16 %v917, %v913
    %v1266 = vpack.c.b16 %v918, %v914
    %v1267 = vpack.c.b16 %v919, %v915
    %v1268 = vpack.c.b16 %v920, %v916
    %v1269 = vpack.c.b16 %v925, %v921
    %v1270 = vpack.c.b16 %v926, %v922
    %v1271 = vpack.c.b16 %v927, %v923
    %v1272 = vpack.c.b16 %v928, %v924
    %v1273 = vpack.c.b16 %v933, %v929
    %v1274 = vpack.c.b16 %v934, %v930
    %v1275 = vpack.c.b16 %v935, %v931
    %v1276 = vpack.c.b16 %v936, %v932
    %v1277 = vpack.c.b16 %v941, %v937
    %v1278 = vpack.c.b16 %v942, %v938
    %v1279 = vpack.c.b16 %v943, %v939
    %v1280 = vpack.c.b16 %v944, %v940
    %v1281 = vpack.c.b16 %v949, %v945
    %v1282 = vpack.c.b16 %v950, %v946
    %v1283 = vpack.c.b16 %v951, %v947
    %v1284 = vpack.c.b16 %v952, %v948
    %v1285 = vpack.c.b16 %v957, %v953
    %v1286 = vpack.c.b16 %v958, %v954
    %v1287 = vpack.c.b16 %v959, %v955
    %v1288 = vpack.c.b16 %v960, %v956
    %v1289 = vpack.c.b16 %v965, %v961
    %v1290 = vpack.c.b16 %v966, %v962
    %v1291 = vpack.c.b16 %v967, %v963
    %v1292 = vpack.c.b16 %v968, %v964
    %v1293 = vpack.c.b16 %v973, %v969
    %v1294 = vpack.c.b16 %v974, %v970
    %v1295 = vpack.c.b16 %v975, %v971
    %v1296 = vpack.c.b16 %v976, %v972
    %v1297 = vpack.c.b16 %v981, %v977
    %v1298 = vpack.c.b16 %v982, %v978
    %v1299 = vpack.c.b16 %v983, %v979
    %v1300 = vpack.c.b16 %v984, %v980
    %v1301 = vpack.c.b16 %v989, %v985
    %v1302 = vpack.c.b16 %v990, %v986
    %v1303 = vpack.c.b16 %v991, %v987
    %v1304 = vpack.c.b16 %v992, %v988
    %v1305 = vpack.c.b16 %v997, %v993
    %v1306 = vpack.c.b16 %v998, %v994
    %v1307 = vpack.c.b16 %v999, %v995
    %v1308 = vpack.c.b16 %v1000, %v996
    %v1309 = vpack.c.b16 %v1005, %v1001
    %v1310 = vpack.c.b16 %v1006, %v1002
    %v1311 = vpack.c.b16 %v1007, %v1003
    %v1312 = vpack.c.b16 %v1008, %v1004
    %v1313 = vpack.c.b16 %v1013, %v1009
    %v1314 = vpack.c.b16 %v1014, %v1010
    %v1315 = vpack.c.b16 %v1015, %v1011
    %v1316 = vpack.c.b16 %v1016, %v1012
    %v1317 = vpack.c.b16 %v1021, %v1017
    %v1318 = vpack.c.b16 %v1022, %v1018
    %v1319 = vpack.c.b16 %v1023, %v1019
    %v1320 = vpack.c.b16 %v1024, %v1020
    %v1321 = vpack.c.b16 %v1029, %v1025
    %v1322 = vpack.c.b16 %v1030, %v1026
    %v1323 = vpack.c.b16 %v1031, %v1027
    %v1324 = vpack.c.b16 %v1032, %v1028
    %v1325 = vpack.c.b16 %v1037, %v1033
    %v1326 = vpack.c.b16 %v1038, %v1034
    %v1327 = vpack.c.b16 %v1039, %v1035
    %v1328 = vpack.c.b16 %v1040, %v1036
    %v1329 = vpack.c.b16 %v1045, %v1041
    %v1330 = vpack.c.b16 %v1046, %v1042
    %v1331 = vpack.c.b16 %v1047, %v1043
    %v1332 = vpack.c.b16 %v1048, %v1044
    %v1333 = vpack.c.b16 %v1053, %v1049
    %v1334 = vpack.c.b16 %v1054, %v1050
    %v1335 = vpack.c.b16 %v1055, %v1051
    %v1336 = vpack.c.b16 %v1056, %v1052
    %v1337 = vpack.c.b16 %v1061, %v1057
    %v1338 = vpack.c.b16 %v1062, %v1058
    %v1339 = vpack.c.b16 %v1063, %v1059
    %v1340 = vpack.c.b16 %v1064, %v1060
    %v1341 = vpack.c.b16 %v1069, %v1065
    %v1342 = vpack.c.b16 %v1070, %v1066
    %v1343 = vpack.c.b16 %v1071, %v1067
    %v1344 = vpack.c.b16 %v1072, %v1068
    %v1345 = vpack.c.b16 %v1077, %v1073
    %v1346 = vpack.c.b16 %v1078, %v1074
    %v1347 = vpack.c.b16 %v1079, %v1075
    %v1348 = vpack.c.b16 %v1080, %v1076
    %v1349 = vpack.c.b16 %v1085, %v1081
    %v1350 = vpack.c.b16 %v1086, %v1082
    %v1351 = vpack.c.b16 %v1087, %v1083
    %v1352 = vpack.c.b16 %v1088, %v1084
    %v1353 = vpack.c.b16 %v1093, %v1089
    %v1354 = vpack.c.b16 %v1094, %v1090
    %v1355 = vpack.c.b16 %v1095, %v1091
    %v1356 = vpack.c.b16 %v1096, %v1092
    %v1357 = vpack.c.b16 %v1101, %v1097
    %v1358 = vpack.c.b16 %v1102, %v1098
    %v1359 = vpack.c.b16 %v1103, %v1099
    %v1360 = vpack.c.b16 %v1104, %v1100
    %v1361 = vpack.c.b16 %v1109, %v1105
    %v1362 = vpack.c.b16 %v1110, %v1106
    %v1363 = vpack.c.b16 %v1111, %v1107
    %v1364 = vpack.c.b16 %v1112, %v1108
    %v1365 = vpack.c.b16 %v1117, %v1113
    %v1366 = vpack.c.b16 %v1118, %v1114
    %v1367 = vpack.c.b16 %v1119, %v1115
    %v1368 = vpack.c.b16 %v1120, %v1116
    %v1369 = vpack.c.b16 %v1125, %v1121
    %v1370 = vpack.c.b16 %v1126, %v1122
    %v1371 = vpack.c.b16 %v1127, %v1123
    %v1372 = vpack.c.b16 %v1128, %v1124
    %v1373 = vpack.c.b16 %v1133, %v1129
    %v1374 = vpack.c.b16 %v1134, %v1130
    %v1375 = vpack.c.b16 %v1135, %v1131
    %v1376 = vpack.c.b16 %v1136, %v1132
    %v1377 = vpack.c.b16 %v1141, %v1137
    %v1378 = vpack.c.b16 %v1142, %v1138
    %v1379 = vpack.c.b16 %v1143, %v1139
    %v1380 = vpack.c.b16 %v1144, %v1140
    %v1381 = vpack.c.b16 %v1149, %v1145
    %v1382 = vpack.c.b16 %v1150, %v1146
    %v1383 = vpack.c.b16 %v1151, %v1147
    %v1384 = vpack.c.b16 %v1152, %v1148
    %v1385 = vpack.c.b16 %v1157, %v1153
    %v1386 = vpack.c.b16 %v1158, %v1154
    %v1387 = vpack.c.b16 %v1159, %v1155
    %v1388 = vpack.c.b16 %v1160, %v1156
    %v1389 = vpack.c.b16 %v1165, %v1161
    %v1390 = vpack.c.b16 %v1166, %v1162
    %v1391 = vpack.c.b16 %v1167, %v1163
    %v1392 = vpack.c.b16 %v1168, %v1164
    %1617 = vmatprep.subr.bf16.mxu0 %v1170
    %1618 = vmatpush1.bf16.msra.mxu0 %v1169
    %1619 = vmatprep.subr.bf16.mxu0 %v1174
    %1620 = vmatpush1.bf16.msra.mxu0 %v1173
    %1621 = vmatprep.subr.bf16.mxu0 %v1178
    %1622 = vmatpush1.bf16.msra.mxu0 %v1177
    %1623 = vmatprep.subr.bf16.mxu0 %v1182
    %1624 = vmatpush1.bf16.msra.mxu0 %v1181
    %1625 = vmatprep.subr.bf16.mxu0 %v1186
    %1626 = vmatpush1.bf16.msra.mxu0 %v1185
    %1627 = vmatprep.subr.bf16.mxu0 %v1190
    %1628 = vmatpush1.bf16.msra.mxu0 %v1189
    %1629 = vmatprep.subr.bf16.mxu0 %v1194
    %1630 = vmatpush1.bf16.msra.mxu0 %v1193
    %1631 = vmatprep.subr.bf16.mxu0 %v1198
    %1632 = vmatpush1.bf16.msra.mxu0 %v1197
    %1633 = vmatprep.subr.bf16.mxu0 %v1202
    %1634 = vmatpush1.bf16.msra.mxu0 %v1201
    %1635 = vmatprep.subr.bf16.mxu0 %v1206
    %1636 = vmatpush1.bf16.msra.mxu0 %v1205
    %1637 = vmatprep.subr.bf16.mxu0 %v1210
    %1638 = vmatpush1.bf16.msra.mxu0 %v1209
    %1639 = vmatprep.subr.bf16.mxu0 %v1214
    %1640 = vmatpush1.bf16.msra.mxu0 %v1213
    %1641 = vmatprep.subr.bf16.mxu0 %v1218
    %1642 = vmatpush1.bf16.msra.mxu0 %v1217
    %1643 = vmatprep.subr.bf16.mxu0 %v1222
    %1644 = vmatpush1.bf16.msra.mxu0 %v1221
    %1645 = vmatprep.subr.bf16.mxu0 %v1226
    %1646 = vmatpush1.bf16.msra.mxu0 %v1225
    %1647 = vmatprep.subr.bf16.mxu0 %v1230
    %1648 = vmatpush1.bf16.msra.mxu0 %v1229
    %1649 = vmatprep.mubr.bf16.mxu0 %v442
    %1650 = vmatmul.mubr.bf16.gmra.mrb[0].mxu0 %v441
    %v1651 = vpop.f32.mrb[0].mxu0
    %v1652 = vadd.f32 %v347, %v1651
    %v1653 = vpop.f32.mrb[0].mxu0
    %v1654 = vadd.f32 %v351, %v1653
    %v1655 = vpop.f32.mrb[0].mxu0
    %v1656 = vadd.f32 %v347, %v1655
    %v1657 = vpop.f32.mrb[0].mxu0
    %v1658 = vadd.f32 %v351, %v1657
    %1659 = vmatprep.mubr.bf16.mxu0 %v449
    %1660 = vmatmul.mubr.bf16.gmra.mrb[0].mxu0 %v448
    %v1661 = vpop.f32.mrb[0].mxu0
    %v1662 = vadd.f32 %v347, %v1661
    %v1663 = vpop.f32.mrb[0].mxu0
    %v1664 = vadd.f32 %v351, %v1663
    %v1665 = vpop.f32.mrb[0].mxu0
    %v1666 = vadd.f32 %v347, %v1665
    %v1667 = vpop.f32.mrb[0].mxu0
    %v1668 = vadd.f32 %v351, %v1667
    %1669 = vmatprep.mubr.bf16.mxu0 %v456
    %1670 = vmatmul.mubr.bf16.gmra.mrb[0].mxu0 %v455
    %v1671 = vpop.f32.mrb[0].mxu0
    %v1672 = vadd.f32 %v347, %v1671
    %v1673 = vpop.f32.mrb[0].mxu0
    %v1674 = vadd.f32 %v351, %v1673
    %v1675 = vpop.f32.mrb[0].mxu0
    %v1676 = vadd.f32 %v347, %v1675
    %v1677 = vpop.f32.mrb[0].mxu0
    %v1678 = vadd.f32 %v351, %v1677
    %1679 = vmatprep.mubr.bf16.mxu0 %v463
    %1680 = vmatmul.mubr.bf16.gmra.mrb[0].mxu0 %v462
    %v1681 = vpop.f32.mrb[0].mxu0
    %v1682 = vadd.f32 %v347, %v1681
    %v1683 = vpop.f32.mrb[0].mxu0
    %v1684 = vadd.f32 %v351, %v1683
    %v1685 = vpop.f32.mrb[0].mxu0
    %v1686 = vpop.f32.mrb[0].mxu0
    %1687 = vdwg.mxu0
    %1688 = vmatprep.subr.bf16.mxu0 %v1234
    %1689 = vmatpush1.bf16.msra.mxu0 %v1233
    %1690 = vmatprep.subr.bf16.mxu0 %v1238
    %1691 = vmatpush1.bf16.msra.mxu0 %v1237
    %1692 = vmatprep.subr.bf16.mxu0 %v1242
    %1693 = vmatpush1.bf16.msra.mxu0 %v1241
    %1694 = vmatprep.subr.bf16.mxu0 %v1246
    %1695 = vmatpush1.bf16.msra.mxu0 %v1245
    %1696 = vmatprep.subr.bf16.mxu0 %v1250
    %1697 = vmatpush1.bf16.msra.mxu0 %v1249
    %1698 = vmatprep.subr.bf16.mxu0 %v1254
    %1699 = vmatpush1.bf16.msra.mxu0 %v1253
    %1700 = vmatprep.subr.bf16.mxu0 %v1258
    %1701 = vmatpush1.bf16.msra.mxu0 %v1257
    %1702 = vmatprep.subr.bf16.mxu0 %v1262
    %1703 = vmatpush1.bf16.msra.mxu0 %v1261
    %1704 = vmatprep.subr.bf16.mxu0 %v1266
    %1705 = vmatpush1.bf16.msra.mxu0 %v1265
    %1706 = vmatprep.subr.bf16.mxu0 %v1270
    %1707 = vmatpush1.bf16.msra.mxu0 %v1269
    %1708 = vmatprep.subr.bf16.mxu0 %v1274
    %1709 = vmatpush1.bf16.msra.mxu0 %v1273
    %1710 = vmatprep.subr.bf16.mxu0 %v1278
    %1711 = vmatpush1.bf16.msra.mxu0 %v1277
    %1712 = vmatprep.subr.bf16.mxu0 %v1282
    %1713 = vmatpush1.bf16.msra.mxu0 %v1281
    %1714 = vmatprep.subr.bf16.mxu0 %v1286
    %1715 = vmatpush1.bf16.msra.mxu0 %v1285
    %1716 = vmatprep.subr.bf16.mxu0 %v1290
    %1717 = vmatpush1.bf16.msra.mxu0 %v1289
    %1718 = vmatprep.subr.bf16.mxu0 %v1294
    %1719 = vmatpush1.bf16.msra.mxu0 %v1293
    %1720 = vmatprep.mubr.bf16.mxu0 %v444
    %1721 = vmatmul.mubr.bf16.gmra.mrb[0].mxu0 %v443
    %v1722 = vpop.f32.mrb[0].mxu0
    %v1723 = vadd.f32 %v1652, %v1722
    %v1724 = vpop.f32.mrb[0].mxu0
    %v1725 = vadd.f32 %v1654, %v1724
    %v1726 = vpop.f32.mrb[0].mxu0
    %v1727 = vadd.f32 %v1656, %v1726
    %v1728 = vpop.f32.mrb[0].mxu0
    %v1729 = vadd.f32 %v1658, %v1728
    %1730 = vmatprep.mubr.bf16.mxu0 %v451
    %1731 = vmatmul.mubr.bf16.gmra.mrb[0].mxu0 %v450
    %v1732 = vpop.f32.mrb[0].mxu0
    %v1733 = vadd.f32 %v1662, %v1732
    %v1734 = vpop.f32.mrb[0].mxu0
    %v1735 = vadd.f32 %v1664, %v1734
    %v1736 = vpop.f32.mrb[0].mxu0
    %v1737 = vadd.f32 %v1666, %v1736
    %v1738 = vpop.f32.mrb[0].mxu0
    %v1739 = vadd.f32 %v1668, %v1738
    %1740 = vmatprep.mubr.bf16.mxu0 %v458
    %1741 = vmatmul.mubr.bf16.gmra.mrb[0].mxu0 %v457
    %v1742 = vpop.f32.mrb[0].mxu0
    %v1743 = vadd.f32 %v1672, %v1742
    %v1744 = vpop.f32.mrb[0].mxu0
    %v1745 = vadd.f32 %v1674, %v1744
    %v1746 = vpop.f32.mrb[0].mxu0
    %v1747 = vadd.f32 %v1676, %v1746
    %v1748 = vpop.f32.mrb[0].mxu0
    %v1749 = vadd.f32 %v1678, %v1748
    %1750 = vmatprep.mubr.bf16.mxu0 %v465
    %1751 = vmatmul.mubr.bf16.gmra.mrb[0].mxu0 %v464
    %v1752 = vpop.f32.mrb[0].mxu0
    %v1753 = vadd.f32 %v1682, %v1752
    %v1754 = vpop.f32.mrb[0].mxu0
    %v1755 = vadd.f32 %v1684, %v1754
    %v1756 = vpop.f32.mrb[0].mxu0
    %v1757 = vpop.f32.mrb[0].mxu0
    %1758 = vdwg.mxu0
    %1759 = vmatprep.subr.bf16.mxu0 %v1298
    %1760 = vmatpush1.bf16.msra.mxu0 %v1297
    %1761 = vmatprep.subr.bf16.mxu0 %v1302
    %1762 = vmatpush1.bf16.msra.mxu0 %v1301
    %1763 = vmatprep.subr.bf16.mxu0 %v1306
    %1764 = vmatpush1.bf16.msra.mxu0 %v1305
    %1765 = vmatprep.subr.bf16.mxu0 %v1310
    %1766 = vmatpush1.bf16.msra.mxu0 %v1309
    %1767 = vmatprep.subr.bf16.mxu0 %v1314
    %1768 = vmatpush1.bf16.msra.mxu0 %v1313
    %1769 = vmatprep.subr.bf16.mxu0 %v1318
    %1770 = vmatpush1.bf16.msra.mxu0 %v1317
    %1771 = vmatprep.subr.bf16.mxu0 %v1322
    %1772 = vmatpush1.bf16.msra.mxu0 %v1321
    %1773 = vmatprep.subr.bf16.mxu0 %v1326
    %1774 = vmatpush1.bf16.msra.mxu0 %v1325
    %1775 = vmatprep.subr.bf16.mxu0 %v1330
    %1776 = vmatpush1.bf16.msra.mxu0 %v1329
    %1777 = vmatprep.subr.bf16.mxu0 %v1334
    %1778 = vmatpush1.bf16.msra.mxu0 %v1333
    %1779 = vmatprep.subr.bf16.mxu0 %v1338
    %1780 = vmatpush1.bf16.msra.mxu0 %v1337
    %1781 = vmatprep.subr.bf16.mxu0 %v1342
    %1782 = vmatpush1.bf16.msra.mxu0 %v1341
    %1783 = vmatprep.subr.bf16.mxu0 %v1346
    %1784 = vmatpush1.bf16.msra.mxu0 %v1345
    %1785 = vmatprep.subr.bf16.mxu0 %v1350
    %1786 = vmatpush1.bf16.msra.mxu0 %v1349
    %1787 = vmatprep.subr.bf16.mxu0 %v1354
    %1788 = vmatpush1.bf16.msra.mxu0 %v1353
    %1789 = vmatprep.subr.bf16.mxu0 %v1358
    %1790 = vmatpush1.bf16.msra.mxu0 %v1357
    %1791 = vmatprep.mubr.bf16.mxu0 %v446
    %1792 = vmatmul.mubr.bf16.gmra.mrb[0].mxu0 %v445
    %v1793 = vpop.f32.mrb[0].mxu0
    %v1794 = vadd.f32 %v1723, %v1793
    %v1795 = vpop.f32.mrb[0].mxu0
    %v1796 = vadd.f32 %v1725, %v1795
    %v1797 = vpop.f32.mrb[0].mxu0
    %v1798 = vadd.f32 %v1727, %v1797
    %v1799 = vpop.f32.mrb[0].mxu0
    %v1800 = vadd.f32 %v1729, %v1799
    %1801 = vmatprep.mubr.bf16.mxu0 %v453
    %1802 = vmatmul.mubr.bf16.gmra.mrb[0].mxu0 %v452
    %v1803 = vpop.f32.mrb[0].mxu0
    %v1804 = vadd.f32 %v1733, %v1803
    %v1805 = vpop.f32.mrb[0].mxu0
    %v1806 = vadd.f32 %v1735, %v1805
    %v1807 = vpop.f32.mrb[0].mxu0
    %v1808 = vadd.f32 %v1737, %v1807
    %v1809 = vpop.f32.mrb[0].mxu0
    %v1810 = vadd.f32 %v1739, %v1809
    %1811 = vmatprep.mubr.bf16.mxu0 %v460
    %1812 = vmatmul.mubr.bf16.gmra.mrb[0].mxu0 %v459
    %v1813 = vpop.f32.mrb[0].mxu0
    %v1814 = vadd.f32 %v1743, %v1813
    %v1815 = vpop.f32.mrb[0].mxu0
    %v1816 = vadd.f32 %v1745, %v1815
    %v1817 = vpop.f32.mrb[0].mxu0
    %v1818 = vadd.f32 %v1747, %v1817
    %v1819 = vpop.f32.mrb[0].mxu0
    %v1820 = vadd.f32 %v1749, %v1819
    %1821 = vmatprep.mubr.bf16.mxu0 %v467
    %1822 = vmatmul.mubr.bf16.gmra.mrb[0].mxu0 %v466
    %v1823 = vpop.f32.mrb[0].mxu0
    %v1824 = vadd.f32 %v1753, %v1823
    %v1825 = vpop.f32.mrb[0].mxu0
    %v1826 = vadd.f32 %v1755, %v1825
    %v1827 = vpop.f32.mrb[0].mxu0
    %v1828 = vpop.f32.mrb[0].mxu0
    %1829 = vdwg.mxu0
    %1830 = vmatprep.subr.bf16.mxu0 %v1362
    %1831 = vmatpush1.bf16.msra.mxu0 %v1361
    %1832 = vmatprep.subr.bf16.mxu0 %v1366
    %1833 = vmatpush1.bf16.msra.mxu0 %v1365
    %1834 = vmatprep.subr.bf16.mxu0 %v1370
    %1835 = vmatpush1.bf16.msra.mxu0 %v1369
    %1836 = vmatprep.subr.bf16.mxu0 %v1374
    %1837 = vmatpush1.bf16.msra.mxu0 %v1373
    %1838 = vmatprep.subr.bf16.mxu0 %v1378
    %1839 = vmatpush1.bf16.msra.mxu0 %v1377
    %1840 = vmatprep.subr.bf16.mxu0 %v1382
    %1841 = vmatpush1.bf16.msra.mxu0 %v1381
    %1842 = vmatprep.subr.bf16.mxu0 %v1386
    %1843 = vmatpush1.bf16.msra.mxu0 %v1385
    %1844 = vmatprep.subr.bf16.mxu0 %v1390
    %1845 = vmatpush1.bf16.msra.mxu0 %v1389
    %1846 = vmatprep.subr.bf16.mxu0 0
    %1847 = vmatpush1.bf16.msra.mxu0 0
    %1848 = vmatprep.subr.bf16.mxu0 0
    %1849 = vmatpush1.bf16.msra.mxu0 0
    %1850 = vmatprep.subr.bf16.mxu0 0
    %1851 = vmatpush1.bf16.msra.mxu0 0
    %1852 = vmatprep.subr.bf16.mxu0 0
    %1853 = vmatpush1.bf16.msra.mxu0 0
    %1854 = vmatprep.subr.bf16.mxu0 0
    %1855 = vmatpush1.bf16.msra.mxu0 0
    %1856 = vmatprep.subr.bf16.mxu0 0
    %1857 = vmatpush1.bf16.msra.mxu0 0
    %1858 = vmatprep.subr.bf16.mxu0 0
    %1859 = vmatpush1.bf16.msra.mxu0 0
    %1860 = vmatprep.subr.bf16.mxu0 0
    %1861 = vmatpush1.bf16.msra.mxu0 0
    %1862 = vmatprep.mubr.bf16.mxu0 0
    %1863 = vmatmul.mubr.bf16.gmra.mrb[0].mxu0 %v447
    %v1864 = vpop.f32.mrb[0].mxu0
    %v1865 = vadd.f32 %v1794, %v1864
    %v1866 = vpop.f32.mrb[0].mxu0
    %v1867 = vadd.f32 %v1796, %v1866
    %v1868 = vpop.f32.mrb[0].mxu0
    %v1869 = vadd.f32 %v1798, %v1868
    %v1870 = vpop.f32.mrb[0].mxu0
    %v1871 = vadd.f32 %v1800, %v1870
    %1872 = vmatprep.mubr.bf16.mxu0 0
    %1873 = vmatmul.mubr.bf16.gmra.mrb[0].mxu0 %v454
    %v1874 = vpop.f32.mrb[0].mxu0
    %v1875 = vadd.f32 %v1804, %v1874
    %v1876 = vpop.f32.mrb[0].mxu0
    %v1877 = vadd.f32 %v1806, %v1876
    %v1878 = vpop.f32.mrb[0].mxu0
    %v1879 = vadd.f32 %v1808, %v1878
    %v1880 = vpop.f32.mrb[0].mxu0
    %v1881 = vadd.f32 %v1810, %v1880
    %1882 = vmatprep.mubr.bf16.mxu0 0
    %1883 = vmatmul.mubr.bf16.gmra.mrb[0].mxu0 %v461
    %v1884 = vpop.f32.mrb[0].mxu0
    %v1885 = vadd.f32 %v1814, %v1884
    %v1886 = vpop.f32.mrb[0].mxu0
    %v1887 = vadd.f32 %v1816, %v1886
    %v1888 = vpop.f32.mrb[0].mxu0
    %v1889 = vadd.f32 %v1818, %v1888
    %v1890 = vpop.f32.mrb[0].mxu0
    %v1891 = vadd.f32 %v1820, %v1890
    %1892 = vmatprep.mubr.bf16.mxu0 0
    %1893 = vmatmul.mubr.bf16.gmra.mrb[0].mxu0 %v468
    %v1894 = vpop.f32.mrb[0].mxu0
    %v1895 = vadd.f32 %v1824, %v1894
    %v1896 = vpop.f32.mrb[0].mxu0
    %v1897 = vadd.f32 %v1826, %v1896
    %v1898 = vpop.f32.mrb[0].mxu0
    %v1899 = vpop.f32.mrb[0].mxu0
    %1900 = vdwg.mxu0
    %1901 = vmatprep.subr.bf16.mxu0 %v1172
    %1902 = vmatpush1.bf16.msra.mxu0 %v1171
    %1903 = vmatprep.subr.bf16.mxu0 %v1176
    %1904 = vmatpush1.bf16.msra.mxu0 %v1175
    %1905 = vmatprep.subr.bf16.mxu0 %v1180
    %1906 = vmatpush1.bf16.msra.mxu0 %v1179
    %1907 = vmatprep.subr.bf16.mxu0 %v1184
    %1908 = vmatpush1.bf16.msra.mxu0 %v1183
    %1909 = vmatprep.subr.bf16.mxu0 %v1188
    %1910 = vmatpush1.bf16.msra.mxu0 %v1187
    %1911 = vmatprep.subr.bf16.mxu0 %v1192
    %1912 = vmatpush1.bf16.msra.mxu0 %v1191
    %1913 = vmatprep.subr.bf16.mxu0 %v1196
    %1914 = vmatpush1.bf16.msra.mxu0 %v1195
    %1915 = vmatprep.subr.bf16.mxu0 %v1200
    %1916 = vmatpush1.bf16.msra.mxu0 %v1199
    %1917 = vmatprep.subr.bf16.mxu0 %v1204
    %1918 = vmatpush1.bf16.msra.mxu0 %v1203
    %1919 = vmatprep.subr.bf16.mxu0 %v1208
    %1920 = vmatpush1.bf16.msra.mxu0 %v1207
    %1921 = vmatprep.subr.bf16.mxu0 %v1212
    %1922 = vmatpush1.bf16.msra.mxu0 %v1211
    %1923 = vmatprep.subr.bf16.mxu0 %v1216
    %1924 = vmatpush1.bf16.msra.mxu0 %v1215
    %1925 = vmatprep.subr.bf16.mxu0 %v1220
    %1926 = vmatpush1.bf16.msra.mxu0 %v1219
    %1927 = vmatprep.subr.bf16.mxu0 %v1224
    %1928 = vmatpush1.bf16.msra.mxu0 %v1223
    %1929 = vmatprep.subr.bf16.mxu0 %v1228
    %1930 = vmatpush1.bf16.msra.mxu0 %v1227
    %1931 = vmatprep.subr.bf16.mxu0 %v1232
    %1932 = vmatpush1.bf16.msra.mxu0 %v1231
    %1933 = vmatprep.mubr.bf16.mxu0 %v442
    %1934 = vmatmul.mubr.bf16.gmra.mrb[0].mxu0 %v441
    %v1935 = vpop.f32.mrb[0].mxu0
    %v1936 = vadd.f32 %v355, %v1935
    %v1937 = vpop.f32.mrb[0].mxu0
    %v1938 = vadd.f32 %v359, %v1937
    %v1939 = vpop.f32.mrb[0].mxu0
    %v1940 = vadd.f32 %v355, %v1939
    %v1941 = vpop.f32.mrb[0].mxu0
    %v1942 = vadd.f32 %v359, %v1941
    %1943 = vmatprep.mubr.bf16.mxu0 %v449
    %1944 = vmatmul.mubr.bf16.gmra.mrb[0].mxu0 %v448
    %v1945 = vpop.f32.mrb[0].mxu0
    %v1946 = vadd.f32 %v355, %v1945
    %v1947 = vpop.f32.mrb[0].mxu0
    %v1948 = vadd.f32 %v359, %v1947
    %v1949 = vpop.f32.mrb[0].mxu0
    %v1950 = vadd.f32 %v355, %v1949
    %v1951 = vpop.f32.mrb[0].mxu0
    %v1952 = vadd.f32 %v359, %v1951
    %1953 = vmatprep.mubr.bf16.mxu0 %v456
    %1954 = vmatmul.mubr.bf16.gmra.mrb[0].mxu0 %v455
    %v1955 = vpop.f32.mrb[0].mxu0
    %v1956 = vadd.f32 %v355, %v1955
    %v1957 = vpop.f32.mrb[0].mxu0
    %v1958 = vadd.f32 %v359, %v1957
    %v1959 = vpop.f32.mrb[0].mxu0
    %v1960 = vadd.f32 %v355, %v1959
    %v1961 = vpop.f32.mrb[0].mxu0
    %v1962 = vadd.f32 %v359, %v1961
    %1963 = vmatprep.mubr.bf16.mxu0 %v463
    %1964 = vmatmul.mubr.bf16.gmra.mrb[0].mxu0 %v462
    %v1965 = vpop.f32.mrb[0].mxu0
    %v1966 = vadd.f32 %v355, %v1965
    %v1967 = vpop.f32.mrb[0].mxu0
    %v1968 = vadd.f32 %v359, %v1967
    %v1969 = vpop.f32.mrb[0].mxu0
    %v1970 = vpop.f32.mrb[0].mxu0
    %1971 = vdwg.mxu0
    %1972 = vmatprep.subr.bf16.mxu0 %v1236
    %1973 = vmatpush1.bf16.msra.mxu0 %v1235
    %1974 = vmatprep.subr.bf16.mxu0 %v1240
    %1975 = vmatpush1.bf16.msra.mxu0 %v1239
    %1976 = vmatprep.subr.bf16.mxu0 %v1244
    %1977 = vmatpush1.bf16.msra.mxu0 %v1243
    %1978 = vmatprep.subr.bf16.mxu0 %v1248
    %1979 = vmatpush1.bf16.msra.mxu0 %v1247
    %1980 = vmatprep.subr.bf16.mxu0 %v1252
    %1981 = vmatpush1.bf16.msra.mxu0 %v1251
    %1982 = vmatprep.subr.bf16.mxu0 %v1256
    %1983 = vmatpush1.bf16.msra.mxu0 %v1255
    %1984 = vmatprep.subr.bf16.mxu0 %v1260
    %1985 = vmatpush1.bf16.msra.mxu0 %v1259
    %1986 = vmatprep.subr.bf16.mxu0 %v1264
    %1987 = vmatpush1.bf16.msra.mxu0 %v1263
    %1988 = vmatprep.subr.bf16.mxu0 %v1268
    %1989 = vmatpush1.bf16.msra.mxu0 %v1267
    %1990 = vmatprep.subr.bf16.mxu0 %v1272
    %1991 = vmatpush1.bf16.msra.mxu0 %v1271
    %1992 = vmatprep.subr.bf16.mxu0 %v1276
    %1993 = vmatpush1.bf16.msra.mxu0 %v1275
    %1994 = vmatprep.subr.bf16.mxu0 %v1280
    %1995 = vmatpush1.bf16.msra.mxu0 %v1279
    %1996 = vmatprep.subr.bf16.mxu0 %v1284
    %1997 = vmatpush1.bf16.msra.mxu0 %v1283
    %1998 = vmatprep.subr.bf16.mxu0 %v1288
    %1999 = vmatpush1.bf16.msra.mxu0 %v1287
    %2000 = vmatprep.subr.bf16.mxu0 %v1292
    %2001 = vmatpush1.bf16.msra.mxu0 %v1291
    %2002 = vmatprep.subr.bf16.mxu0 %v1296
    %2003 = vmatpush1.bf16.msra.mxu0 %v1295
    %2004 = vmatprep.mubr.bf16.mxu0 %v444
    %2005 = vmatmul.mubr.bf16.gmra.mrb[0].mxu0 %v443
    %v2006 = vpop.f32.mrb[0].mxu0
    %v2007 = vadd.f32 %v1936, %v2006
    %v2008 = vpop.f32.mrb[0].mxu0
    %v2009 = vadd.f32 %v1938, %v2008
    %v2010 = vpop.f32.mrb[0].mxu0
    %v2011 = vadd.f32 %v1940, %v2010
    %v2012 = vpop.f32.mrb[0].mxu0
    %v2013 = vadd.f32 %v1942, %v2012
    %2014 = vmatprep.mubr.bf16.mxu0 %v451
    %2015 = vmatmul.mubr.bf16.gmra.mrb[0].mxu0 %v450
    %v2016 = vpop.f32.mrb[0].mxu0
    %v2017 = vadd.f32 %v1946, %v2016
    %v2018 = vpop.f32.mrb[0].mxu0
    %v2019 = vadd.f32 %v1948, %v2018
    %v2020 = vpop.f32.mrb[0].mxu0
    %v2021 = vadd.f32 %v1950, %v2020
    %v2022 = vpop.f32.mrb[0].mxu0
    %v2023 = vadd.f32 %v1952, %v2022
    %2024 = vmatprep.mubr.bf16.mxu0 %v458
    %2025 = vmatmul.mubr.bf16.gmra.mrb[0].mxu0 %v457
    %v2026 = vpop.f32.mrb[0].mxu0
    %v2027 = vadd.f32 %v1956, %v2026
    %v2028 = vpop.f32.mrb[0].mxu0
    %v2029 = vadd.f32 %v1958, %v2028
    %v2030 = vpop.f32.mrb[0].mxu0
    %v2031 = vadd.f32 %v1960, %v2030
    %v2032 = vpop.f32.mrb[0].mxu0
    %v2033 = vadd.f32 %v1962, %v2032
    %2034 = vmatprep.mubr.bf16.mxu0 %v465
    %2035 = vmatmul.mubr.bf16.gmra.mrb[0].mxu0 %v464
    %v2036 = vpop.f32.mrb[0].mxu0
    %v2037 = vadd.f32 %v1966, %v2036
    %v2038 = vpop.f32.mrb[0].mxu0
    %v2039 = vadd.f32 %v1968, %v2038
    %v2040 = vpop.f32.mrb[0].mxu0
    %v2041 = vpop.f32.mrb[0].mxu0
    %2042 = vdwg.mxu0
    %2043 = vmatprep.subr.bf16.mxu0 %v1300
    %2044 = vmatpush1.bf16.msra.mxu0 %v1299
    %2045 = vmatprep.subr.bf16.mxu0 %v1304
    %2046 = vmatpush1.bf16.msra.mxu0 %v1303
    %2047 = vmatprep.subr.bf16.mxu0 %v1308
    %2048 = vmatpush1.bf16.msra.mxu0 %v1307
    %2049 = vmatprep.subr.bf16.mxu0 %v1312
    %2050 = vmatpush1.bf16.msra.mxu0 %v1311
    %2051 = vmatprep.subr.bf16.mxu0 %v1316
    %2052 = vmatpush1.bf16.msra.mxu0 %v1315
    %2053 = vmatprep.subr.bf16.mxu0 %v1320
    %2054 = vmatpush1.bf16.msra.mxu0 %v1319
    %2055 = vmatprep.subr.bf16.mxu0 %v1324
    %2056 = vmatpush1.bf16.msra.mxu0 %v1323
    %2057 = vmatprep.subr.bf16.mxu0 %v1328
    %2058 = vmatpush1.bf16.msra.mxu0 %v1327
    %2059 = vmatprep.subr.bf16.mxu0 %v1332
    %2060 = vmatpush1.bf16.msra.mxu0 %v1331
    %2061 = vmatprep.subr.bf16.mxu0 %v1336
    %2062 = vmatpush1.bf16.msra.mxu0 %v1335
    %2063 = vmatprep.subr.bf16.mxu0 %v1340
    %2064 = vmatpush1.bf16.msra.mxu0 %v1339
    %2065 = vmatprep.subr.bf16.mxu0 %v1344
    %2066 = vmatpush1.bf16.msra.mxu0 %v1343
    %2067 = vmatprep.subr.bf16.mxu0 %v1348
    %2068 = vmatpush1.bf16.msra.mxu0 %v1347
    %2069 = vmatprep.subr.bf16.mxu0 %v1352
    %2070 = vmatpush1.bf16.msra.mxu0 %v1351
    %2071 = vmatprep.subr.bf16.mxu0 %v1356
    %2072 = vmatpush1.bf16.msra.mxu0 %v1355
    %2073 = vmatprep.subr.bf16.mxu0 %v1360
    %2074 = vmatpush1.bf16.msra.mxu0 %v1359
    %2075 = vmatprep.mubr.bf16.mxu0 %v446
    %2076 = vmatmul.mubr.bf16.gmra.mrb[0].mxu0 %v445
    %v2077 = vpop.f32.mrb[0].mxu0
    %v2078 = vadd.f32 %v2007, %v2077
    %v2079 = vpop.f32.mrb[0].mxu0
    %v2080 = vadd.f32 %v2009, %v2079
    %v2081 = vpop.f32.mrb[0].mxu0
    %v2082 = vadd.f32 %v2011, %v2081
    %v2083 = vpop.f32.mrb[0].mxu0
    %v2084 = vadd.f32 %v2013, %v2083
    %2085 = vmatprep.mubr.bf16.mxu0 %v453
    %2086 = vmatmul.mubr.bf16.gmra.mrb[0].mxu0 %v452
    %v2087 = vpop.f32.mrb[0].mxu0
    %v2088 = vadd.f32 %v2017, %v2087
    %v2089 = vpop.f32.mrb[0].mxu0
    %v2090 = vadd.f32 %v2019, %v2089
    %v2091 = vpop.f32.mrb[0].mxu0
    %v2092 = vadd.f32 %v2021, %v2091
    %v2093 = vpop.f32.mrb[0].mxu0
    %v2094 = vadd.f32 %v2023, %v2093
    %2095 = vmatprep.mubr.bf16.mxu0 %v460
    %2096 = vmatmul.mubr.bf16.gmra.mrb[0].mxu0 %v459
    %v2097 = vpop.f32.mrb[0].mxu0
    %v2098 = vadd.f32 %v2027, %v2097
    %v2099 = vpop.f32.mrb[0].mxu0
    %v2100 = vadd.f32 %v2029, %v2099
    %v2101 = vpop.f32.mrb[0].mxu0
    %v2102 = vadd.f32 %v2031, %v2101
    %v2103 = vpop.f32.mrb[0].mxu0
    %v2104 = vadd.f32 %v2033, %v2103
    %2105 = vmatprep.mubr.bf16.mxu0 %v467
    %2106 = vmatmul.mubr.bf16.gmra.mrb[0].mxu0 %v466
    %v2107 = vpop.f32.mrb[0].mxu0
    %v2108 = vadd.f32 %v2037, %v2107
    %v2109 = vpop.f32.mrb[0].mxu0
    %v2110 = vadd.f32 %v2039, %v2109
    %v2111 = vpop.f32.mrb[0].mxu0
    %v2112 = vpop.f32.mrb[0].mxu0
    %2113 = vdwg.mxu0
    %2114 = vmatprep.subr.bf16.mxu0 %v1364
    %2115 = vmatpush1.bf16.msra.mxu0 %v1363
    %2116 = vmatprep.subr.bf16.mxu0 %v1368
    %2117 = vmatpush1.bf16.msra.mxu0 %v1367
    %2118 = vmatprep.subr.bf16.mxu0 %v1372
    %2119 = vmatpush1.bf16.msra.mxu0 %v1371
    %2120 = vmatprep.subr.bf16.mxu0 %v1376
    %2121 = vmatpush1.bf16.msra.mxu0 %v1375
    %2122 = vmatprep.subr.bf16.mxu0 %v1380
    %2123 = vmatpush1.bf16.msra.mxu0 %v1379
    %2124 = vmatprep.subr.bf16.mxu0 %v1384
    %2125 = vmatpush1.bf16.msra.mxu0 %v1383
    %2126 = vmatprep.subr.bf16.mxu0 %v1388
    %2127 = vmatpush1.bf16.msra.mxu0 %v1387
    %2128 = vmatprep.subr.bf16.mxu0 %v1392
    %2129 = vmatpush1.bf16.msra.mxu0 %v1391
    %2130 = vmatprep.subr.bf16.mxu0 0
    %2131 = vmatpush1.bf16.msra.mxu0 0
    %2132 = vmatprep.subr.bf16.mxu0 0
    %2133 = vmatpush1.bf16.msra.mxu0 0
    %2134 = vmatprep.subr.bf16.mxu0 0
    %2135 = vmatpush1.bf16.msra.mxu0 0
    %2136 = vmatprep.subr.bf16.mxu0 0
    %2137 = vmatpush1.bf16.msra.mxu0 0
    %2138 = vmatprep.subr.bf16.mxu0 0
    %2139 = vmatpush1.bf16.msra.mxu0 0
    %2140 = vmatprep.subr.bf16.mxu0 0
    %2141 = vmatpush1.bf16.msra.mxu0 0
    %2142 = vmatprep.subr.bf16.mxu0 0
    %2143 = vmatpush1.bf16.msra.mxu0 0
    %2144 = vmatprep.subr.bf16.mxu0 0
    %2145 = vmatpush1.bf16.msra.mxu0 0
    %2146 = vmatprep.mubr.bf16.mxu0 0
    %2147 = vmatmul.mubr.bf16.gmra.mrb[0].mxu0 %v447
    %v2148 = vpop.f32.mrb[0].mxu0
    %v2149 = vadd.f32 %v2078, %v2148
    %v2150 = vpop.f32.mrb[0].mxu0
    %v2151 = vadd.f32 %v2080, %v2150
    %v2152 = vpop.f32.mrb[0].mxu0
    %v2153 = vadd.f32 %v2082, %v2152
    %v2154 = vpop.f32.mrb[0].mxu0
    %v2155 = vadd.f32 %v2084, %v2154
    %2156 = vmatprep.mubr.bf16.mxu0 0
    %2157 = vmatmul.mubr.bf16.gmra.mrb[0].mxu0 %v454
    %v2158 = vpop.f32.mrb[0].mxu0
    %v2159 = vadd.f32 %v2088, %v2158
    %v2160 = vpop.f32.mrb[0].mxu0
    %v2161 = vadd.f32 %v2090, %v2160
    %v2162 = vpop.f32.mrb[0].mxu0
    %v2163 = vadd.f32 %v2092, %v2162
    %v2164 = vpop.f32.mrb[0].mxu0
    %v2165 = vadd.f32 %v2094, %v2164
    %2166 = vmatprep.mubr.bf16.mxu0 0
    %2167 = vmatmul.mubr.bf16.gmra.mrb[0].mxu0 %v461
    %v2168 = vpop.f32.mrb[0].mxu0
    %v2169 = vadd.f32 %v2098, %v2168
    %v2170 = vpop.f32.mrb[0].mxu0
    %v2171 = vadd.f32 %v2100, %v2170
    %v2172 = vpop.f32.mrb[0].mxu0
    %v2173 = vadd.f32 %v2102, %v2172
    %v2174 = vpop.f32.mrb[0].mxu0
    %v2175 = vadd.f32 %v2104, %v2174
    %2176 = vmatprep.mubr.bf16.mxu0 0
    %2177 = vmatmul.mubr.bf16.gmra.mrb[0].mxu0 %v468
    %v2178 = vpop.f32.mrb[0].mxu0
    %v2179 = vadd.f32 %v2108, %v2178
    %v2180 = vpop.f32.mrb[0].mxu0
    %v2181 = vadd.f32 %v2110, %v2180
    %v2182 = vpop.f32.mrb[0].mxu0
    %v2183 = vpop.f32.mrb[0].mxu0
    %2184 = vdwg.mxu0
    %vm2185 = vcmp.ge.f32.partialorder %v1865, 0.0
    %vm2186 = vcmp.ge.f32.partialorder %v1867, 0.0
    %vm2187 = vcmp.ge.f32.partialorder %v2149, 0.0
    %vm2188 = vcmp.ge.f32.partialorder %v2151, 0.0
    %vm2189 = vcmp.ge.f32.partialorder %v1869, 0.0
    %vm2190 = vcmp.ge.f32.partialorder %v1871, 0.0
    %vm2191 = vcmp.ge.f32.partialorder %v2153, 0.0
    %vm2192 = vcmp.ge.f32.partialorder %v2155, 0.0
    %vm2193 = vcmp.ge.f32.partialorder %v1875, 0.0
    %vm2194 = vcmp.ge.f32.partialorder %v1877, 0.0
    %vm2195 = vcmp.ge.f32.partialorder %v2159, 0.0
    %vm2196 = vcmp.ge.f32.partialorder %v2161, 0.0
    %vm2197 = vcmp.ge.f32.partialorder %v1879, 0.0
    %vm2198 = vcmp.ge.f32.partialorder %v1881, 0.0
    %vm2199 = vcmp.ge.f32.partialorder %v2163, 0.0
    %vm2200 = vcmp.ge.f32.partialorder %v2165, 0.0
    %vm2201 = vcmp.ge.f32.partialorder %v1885, 0.0
    %vm2202 = vcmp.ge.f32.partialorder %v1887, 0.0
    %vm2203 = vcmp.ge.f32.partialorder %v2169, 0.0
    %vm2204 = vcmp.ge.f32.partialorder %v2171, 0.0
    %vm2205 = vcmp.ge.f32.partialorder %v1889, 0.0
    %vm2206 = vcmp.ge.f32.partialorder %v1891, 0.0
    %vm2207 = vcmp.ge.f32.partialorder %v2173, 0.0
    %vm2208 = vcmp.ge.f32.partialorder %v2175, 0.0
    %vm2209 = vcmp.ge.f32.partialorder %v1895, 0.0
    %vm2210 = vcmp.ge.f32.partialorder %v1897, 0.0
    %vm2211 = vcmp.ge.f32.partialorder %v2179, 0.0
    %vm2212 = vcmp.ge.f32.partialorder %v2181, 0.0
    %v2213 = vmul.f32 %v1865, 0.2
    %v2214 = vmul.f32 %v1867, 0.2
    %v2215 = vmul.f32 %v2149, 0.2
    %v2216 = vmul.f32 %v2151, 0.2
    %v2217 = vmul.f32 %v1869, 0.2
    %v2218 = vmul.f32 %v1871, 0.2
    %v2219 = vmul.f32 %v2153, 0.2
    %v2220 = vmul.f32 %v2155, 0.2
    %v2221 = vmul.f32 %v1875, 0.2
    %v2222 = vmul.f32 %v1877, 0.2
    %v2223 = vmul.f32 %v2159, 0.2
    %v2224 = vmul.f32 %v2161, 0.2
    %v2225 = vmul.f32 %v1879, 0.2
    %v2226 = vmul.f32 %v1881, 0.2
    %v2227 = vmul.f32 %v2163, 0.2
    %v2228 = vmul.f32 %v2165, 0.2
    %v2229 = vmul.f32 %v1885, 0.2
    %v2230 = vmul.f32 %v1887, 0.2
    %v2231 = vmul.f32 %v2169, 0.2
    %v2232 = vmul.f32 %v2171, 0.2
    %v2233 = vmul.f32 %v1889, 0.2
    %v2234 = vmul.f32 %v1891, 0.2
    %v2235 = vmul.f32 %v2173, 0.2
    %v2236 = vmul.f32 %v2175, 0.2
    %v2237 = vmul.f32 %v1895, 0.2
    %v2238 = vmul.f32 %v1897, 0.2
    %v2239 = vmul.f32 %v2179, 0.2
    %v2240 = vmul.f32 %v2181, 0.2
    %v2241 = vsel %vm2185, %v1865, %v2213
    %v2242 = vsel %vm2186, %v1867, %v2214
    %v2243 = vsel %vm2187, %v2149, %v2215
    %v2244 = vsel %vm2188, %v2151, %v2216
    %v2245 = vsel %vm2189, %v1869, %v2217
    %v2246 = vsel %vm2190, %v1871, %v2218
    %v2247 = vsel %vm2191, %v2153, %v2219
    %v2248 = vsel %vm2192, %v2155, %v2220
    %v2249 = vsel %vm2193, %v1875, %v2221
    %v2250 = vsel %vm2194, %v1877, %v2222
    %v2251 = vsel %vm2195, %v2159, %v2223
    %v2252 = vsel %vm2196, %v2161, %v2224
    %v2253 = vsel %vm2197, %v1879, %v2225
    %v2254 = vsel %vm2198, %v1881, %v2226
    %v2255 = vsel %vm2199, %v2163, %v2227
    %v2256 = vsel %vm2200, %v2165, %v2228
    %v2257 = vsel %vm2201, %v1885, %v2229
    %v2258 = vsel %vm2202, %v1887, %v2230
    %v2259 = vsel %vm2203, %v2169, %v2231
    %v2260 = vsel %vm2204, %v2171, %v2232
    %v2261 = vsel %vm2205, %v1889, %v2233
    %v2262 = vsel %vm2206, %v1891, %v2234
    %v2263 = vsel %vm2207, %v2173, %v2235
    %v2264 = vsel %vm2208, %v2175, %v2236
    %v2265 = vsel %vm2209, %v1895, %v2237
    %v2266 = vsel %vm2210, %v1897, %v2238
    %v2267 = vsel %vm2211, %v2179, %v2239
    %v2268 = vsel %vm2212, %v2181, %v2240
    %v2269 = vpack.c.bf16 %v2245, %v2241
    %v2270 = vpack.c.bf16 %v2246, %v2242
    %v2271 = vpack.c.bf16 %v2247, %v2243
    %v2272 = vpack.c.bf16 %v2248, %v2244
    %v2273 = vpack.c.bf16 %v2253, %v2249
    %v2274 = vpack.c.bf16 %v2254, %v2250
    %v2275 = vpack.c.bf16 %v2255, %v2251
    %v2276 = vpack.c.bf16 %v2256, %v2252
    %v2277 = vpack.c.bf16 %v2261, %v2257
    %v2278 = vpack.c.bf16 %v2262, %v2258
    %v2279 = vpack.c.bf16 %v2263, %v2259
    %v2280 = vpack.c.bf16 %v2264, %v2260
    %v2281 = vpack.c.bf16 %v2265, %v2265
    %v2282 = vpack.c.bf16 %v2266, %v2266
    %v2283 = vpack.c.bf16 %v2267, %v2267
    %v2284 = vpack.c.bf16 %v2268, %v2268
    %v2285 = vld [vmem:[#allocation7] sm:$0xff]
    %v2286 = vld [vmem:[#allocation7 + $0x8] sm:$0xff]
    %v2287 = vld [vmem:[#allocation7 + $0x10] sm:$0xff]
    %v2288 = vld [vmem:[#allocation7 + $0x18] sm:$0xff]
    %v2289 = vld [vmem:[#allocation7 + $0x20] sm:$0xff]
    %v2290 = vld [vmem:[#allocation7 + $0x28] sm:$0xff]
    %v2291 = vld [vmem:[#allocation7 + $0x30] sm:$0xff]
    %v2292 = vld [vmem:[#allocation7 + $0x38] sm:$0xff]
    %v2293 = vld [vmem:[#allocation7 + $0x40] sm:$0xff]
    %v2294 = vld [vmem:[#allocation7 + $0x48] sm:$0xff]
    %v2295 = vld [vmem:[#allocation7 + $0x50] sm:$0xff]
    %v2296 = vld [vmem:[#allocation7 + $0x58] sm:$0xff]
    %v2297 = vld [vmem:[#allocation7 + $0x60] sm:$0xff]
    %v2298 = vld [vmem:[#allocation7 + $0x68] sm:$0xff]
    %v2299 = vld [vmem:[#allocation7 + $0x70] sm:$0xff]
    %v2300 = vld [vmem:[#allocation7 + $0x78] sm:$0xff]
    %v2301 = vld [vmem:[#allocation7 + $0x80] sm:$0xff]
    %v2302 = vld [vmem:[#allocation7 + $0x88] sm:$0xff]
    %v2303 = vld [vmem:[#allocation7 + $0x90] sm:$0xff]
    %v2304 = vld [vmem:[#allocation7 + $0x98] sm:$0xff]
    %v2305 = vld [vmem:[#allocation7 + $0xa0] sm:$0xff]
    %v2306 = vld [vmem:[#allocation7 + $0xa8] sm:$0xff]
    %v2307 = vld [vmem:[#allocation7 + $0xb0] sm:$0xff]
    %v2308 = vld [vmem:[#allocation7 + $0xb8] sm:$0xff]
    %v2309 = vld [vmem:[#allocation7 + $0xc0] sm:$0xff]
    %v2310 = vld [vmem:[#allocation7 + $0xc8] sm:$0xff]
    %v2311 = vld [vmem:[#allocation7 + $0xd0] sm:$0xff]
    %v2312 = vld [vmem:[#allocation7 + $0xd8] sm:$0xff]
    %v2313 = vld [vmem:[#allocation7 + $0xe0] sm:$0xff]
    %v2314 = vld [vmem:[#allocation7 + $0xe8] sm:$0xff]
    %v2315 = vld [vmem:[#allocation7 + $0xf0] sm:$0xff]
    %v2316 = vld [vmem:[#allocation7 + $0xf8] sm:$0xff]
    %v2317 = vld [vmem:[#allocation7 + $0x100] sm:$0xff]
    %v2318 = vld [vmem:[#allocation7 + $0x108] sm:$0xff]
    %v2319 = vld [vmem:[#allocation7 + $0x110] sm:$0xff]
    %v2320 = vld [vmem:[#allocation7 + $0x118] sm:$0xff]
    %v2321 = vld [vmem:[#allocation7 + $0x120] sm:$0xff]
    %v2322 = vld [vmem:[#allocation7 + $0x128] sm:$0xff]
    %v2323 = vld [vmem:[#allocation7 + $0x130] sm:$0xff]
    %v2324 = vld [vmem:[#allocation7 + $0x138] sm:$0xff]
    %v2325 = vld [vmem:[#allocation7 + $0x140] sm:$0xff]
    %v2326 = vld [vmem:[#allocation7 + $0x148] sm:$0xff]
    %v2327 = vld [vmem:[#allocation7 + $0x150] sm:$0xff]
    %v2328 = vld [vmem:[#allocation7 + $0x158] sm:$0xff]
    %v2329 = vld [vmem:[#allocation7 + $0x160] sm:$0xff]
    %v2330 = vld [vmem:[#allocation7 + $0x168] sm:$0xff]
    %v2331 = vld [vmem:[#allocation7 + $0x170] sm:$0xff]
    %v2332 = vld [vmem:[#allocation7 + $0x178] sm:$0xff]
    %v2333 = vld [vmem:[#allocation7 + $0x180] sm:$0xff]
    %v2334 = vld [vmem:[#allocation7 + $0x188] sm:$0xff]
    %v2335 = vld [vmem:[#allocation7 + $0x190] sm:$0xff]
    %v2336 = vld [vmem:[#allocation7 + $0x198] sm:$0xff]
    %v2337 = vld [vmem:[#allocation7 + $0x1a0] sm:$0xff]
    %v2338 = vld [vmem:[#allocation7 + $0x1a8] sm:$0xff]
    %v2339 = vld [vmem:[#allocation7 + $0x1b0] sm:$0xff]
    %v2340 = vld [vmem:[#allocation7 + $0x1b8] sm:$0xff]
    %v2341 = vld [vmem:[#allocation7 + $0x1c0] sm:$0xff]
    %v2342 = vld [vmem:[#allocation7 + $0x1c8] sm:$0xff]
    %v2343 = vld [vmem:[#allocation7 + $0x1d0] sm:$0xff]
    %v2344 = vld [vmem:[#allocation7 + $0x1d8] sm:$0xff]
    %v2345 = vld [vmem:[#allocation7 + $0x1e0] sm:$0xff]
    %v2346 = vld [vmem:[#allocation7 + $0x1e8] sm:$0xff]
    %v2347 = vld [vmem:[#allocation7 + $0x1f0] sm:$0xff]
    %v2348 = vld [vmem:[#allocation7 + $0x1f8] sm:$0xff]
    %v2349 = vld [vmem:[%s4] sm:$0x3]
    %v2351 = vlaneseq
    %v2352 = vshrl.u32 %v2351, 7
    %v2353 = vsub.s32 0, %v2352
    %v2354 = vrot.slane %v2349, %v2353
    %v2355 = vlaneseq
    %v2356 = vshrl.u32 %v2355, 7
    %v2357 = vsub.s32 1, %v2356
    %v2358 = vrot.slane %v2349, %v2357
    %v2425 = vunpack.c.l.b16 %v2285
    %v2426 = vunpack.c.h.b16 %v2285
    %v2427 = vunpack.c.l.b16 %v2286
    %v2428 = vunpack.c.h.b16 %v2286
    %v2429 = vunpack.c.l.b16 %v2287
    %v2430 = vunpack.c.h.b16 %v2287
    %v2431 = vunpack.c.l.b16 %v2288
    %v2432 = vunpack.c.h.b16 %v2288
    %v2433 = vunpack.c.l.b16 %v2289
    %v2434 = vunpack.c.h.b16 %v2289
    %v2435 = vunpack.c.l.b16 %v2290
    %v2436 = vunpack.c.h.b16 %v2290
    %v2437 = vunpack.c.l.b16 %v2291
    %v2438 = vunpack.c.h.b16 %v2291
    %v2439 = vunpack.c.l.b16 %v2292
    %v2440 = vunpack.c.h.b16 %v2292
    %v2441 = vunpack.c.l.b16 %v2293
    %v2442 = vunpack.c.h.b16 %v2293
    %v2443 = vunpack.c.l.b16 %v2294
    %v2444 = vunpack.c.h.b16 %v2294
    %v2445 = vunpack.c.l.b16 %v2295
    %v2446 = vunpack.c.h.b16 %v2295
    %v2447 = vunpack.c.l.b16 %v2296
    %v2448 = vunpack.c.h.b16 %v2296
    %v2449 = vunpack.c.l.b16 %v2297
    %v2450 = vunpack.c.h.b16 %v2297
    %v2451 = vunpack.c.l.b16 %v2298
    %v2452 = vunpack.c.h.b16 %v2298
    %v2453 = vunpack.c.l.b16 %v2299
    %v2454 = vunpack.c.h.b16 %v2299
    %v2455 = vunpack.c.l.b16 %v2300
    %v2456 = vunpack.c.h.b16 %v2300
    %v2457 = vunpack.c.l.b16 %v2301
    %v2458 = vunpack.c.h.b16 %v2301
    %v2459 = vunpack.c.l.b16 %v2302
    %v2460 = vunpack.c.h.b16 %v2302
    %v2461 = vunpack.c.l.b16 %v2303
    %v2462 = vunpack.c.h.b16 %v2303
    %v2463 = vunpack.c.l.b16 %v2304
    %v2464 = vunpack.c.h.b16 %v2304
    %v2465 = vunpack.c.l.b16 %v2305
    %v2466 = vunpack.c.h.b16 %v2305
    %v2467 = vunpack.c.l.b16 %v2306
    %v2468 = vunpack.c.h.b16 %v2306
    %v2469 = vunpack.c.l.b16 %v2307
    %v2470 = vunpack.c.h.b16 %v2307
    %v2471 = vunpack.c.l.b16 %v2308
    %v2472 = vunpack.c.h.b16 %v2308
    %v2473 = vunpack.c.l.b16 %v2309
    %v2474 = vunpack.c.h.b16 %v2309
    %v2475 = vunpack.c.l.b16 %v2310
    %v2476 = vunpack.c.h.b16 %v2310
    %v2477 = vunpack.c.l.b16 %v2311
    %v2478 = vunpack.c.h.b16 %v2311
    %v2479 = vunpack.c.l.b16 %v2312
    %v2480 = vunpack.c.h.b16 %v2312
    %v2481 = vunpack.c.l.b16 %v2313
    %v2482 = vunpack.c.h.b16 %v2313
    %v2483 = vunpack.c.l.b16 %v2314
    %v2484 = vunpack.c.h.b16 %v2314
    %v2485 = vunpack.c.l.b16 %v2315
    %v2486 = vunpack.c.h.b16 %v2315
    %v2487 = vunpack.c.l.b16 %v2316
    %v2488 = vunpack.c.h.b16 %v2316
    %v2489 = vunpack.c.l.b16 %v2317
    %v2490 = vunpack.c.h.b16 %v2317
    %v2491 = vunpack.c.l.b16 %v2318
    %v2492 = vunpack.c.h.b16 %v2318
    %v2493 = vunpack.c.l.b16 %v2319
    %v2494 = vunpack.c.h.b16 %v2319
    %v2495 = vunpack.c.l.b16 %v2320
    %v2496 = vunpack.c.h.b16 %v2320
    %v2497 = vunpack.c.l.b16 %v2321
    %v2498 = vunpack.c.h.b16 %v2321
    %v2499 = vunpack.c.l.b16 %v2322
    %v2500 = vunpack.c.h.b16 %v2322
    %v2501 = vunpack.c.l.b16 %v2323
    %v2502 = vunpack.c.h.b16 %v2323
    %v2503 = vunpack.c.l.b16 %v2324
    %v2504 = vunpack.c.h.b16 %v2324
    %v2505 = vunpack.c.l.b16 %v2325
    %v2506 = vunpack.c.h.b16 %v2325
    %v2507 = vunpack.c.l.b16 %v2326
    %v2508 = vunpack.c.h.b16 %v2326
    %v2509 = vunpack.c.l.b16 %v2327
    %v2510 = vunpack.c.h.b16 %v2327
    %v2511 = vunpack.c.l.b16 %v2328
    %v2512 = vunpack.c.h.b16 %v2328
    %v2513 = vunpack.c.l.b16 %v2329
    %v2514 = vunpack.c.h.b16 %v2329
    %v2515 = vunpack.c.l.b16 %v2330
    %v2516 = vunpack.c.h.b16 %v2330
    %v2517 = vunpack.c.l.b16 %v2331
    %v2518 = vunpack.c.h.b16 %v2331
    %v2519 = vunpack.c.l.b16 %v2332
    %v2520 = vunpack.c.h.b16 %v2332
    %v2521 = vunpack.c.l.b16 %v2333
    %v2522 = vunpack.c.h.b16 %v2333
    %v2523 = vunpack.c.l.b16 %v2334
    %v2524 = vunpack.c.h.b16 %v2334
    %v2525 = vunpack.c.l.b16 %v2335
    %v2526 = vunpack.c.h.b16 %v2335
    %v2527 = vunpack.c.l.b16 %v2336
    %v2528 = vunpack.c.h.b16 %v2336
    %v2529 = vunpack.c.l.b16 %v2337
    %v2530 = vunpack.c.h.b16 %v2337
    %v2531 = vunpack.c.l.b16 %v2338
    %v2532 = vunpack.c.h.b16 %v2338
    %v2533 = vunpack.c.l.b16 %v2339
    %v2534 = vunpack.c.h.b16 %v2339
    %v2535 = vunpack.c.l.b16 %v2340
    %v2536 = vunpack.c.h.b16 %v2340
    %v2537 = vunpack.c.l.b16 %v2341
    %v2538 = vunpack.c.h.b16 %v2341
    %v2539 = vunpack.c.l.b16 %v2342
    %v2540 = vunpack.c.h.b16 %v2342
    %v2541 = vunpack.c.l.b16 %v2343
    %v2542 = vunpack.c.h.b16 %v2343
    %v2543 = vunpack.c.l.b16 %v2344
    %v2544 = vunpack.c.h.b16 %v2344
    %v2545 = vunpack.c.l.b16 %v2345
    %v2546 = vunpack.c.h.b16 %v2345
    %v2547 = vunpack.c.l.b16 %v2346
    %v2548 = vunpack.c.h.b16 %v2346
    %v2549 = vunpack.c.l.b16 %v2347
    %v2550 = vunpack.c.h.b16 %v2347
    %v2551 = vunpack.c.l.b16 %v2348
    %v2552 = vunpack.c.h.b16 %v2348
    %v2553 = vpack.c.b16 %v2427, %v2425
    %v2554 = vpack.c.b16 %v2428, %v2426
    %v2555 = vpack.c.b16 %v2431, %v2429
    %v2556 = vpack.c.b16 %v2432, %v2430
    %v2557 = vpack.c.b16 %v2435, %v2433
    %v2558 = vpack.c.b16 %v2436, %v2434
    %v2559 = vpack.c.b16 %v2439, %v2437
    %v2560 = vpack.c.b16 %v2440, %v2438
    %v2561 = vpack.c.b16 %v2443, %v2441
    %v2562 = vpack.c.b16 %v2444, %v2442
    %v2563 = vpack.c.b16 %v2447, %v2445
    %v2564 = vpack.c.b16 %v2448, %v2446
    %v2565 = vpack.c.b16 %v2451, %v2449
    %v2566 = vpack.c.b16 %v2452, %v2450
    %v2567 = vpack.c.b16 %v2455, %v2453
    %v2568 = vpack.c.b16 %v2456, %v2454
    %v2569 = vpack.c.b16 %v2459, %v2457
    %v2570 = vpack.c.b16 %v2460, %v2458
    %v2571 = vpack.c.b16 %v2463, %v2461
    %v2572 = vpack.c.b16 %v2464, %v2462
    %v2573 = vpack.c.b16 %v2467, %v2465
    %v2574 = vpack.c.b16 %v2468, %v2466
    %v2575 = vpack.c.b16 %v2471, %v2469
    %v2576 = vpack.c.b16 %v2472, %v2470
    %v2577 = vpack.c.b16 %v2475, %v2473
    %v2578 = vpack.c.b16 %v2476, %v2474
    %v2579 = vpack.c.b16 %v2479, %v2477
    %v2580 = vpack.c.b16 %v2480, %v2478
    %v2581 = vpack.c.b16 %v2483, %v2481
    %v2582 = vpack.c.b16 %v2484, %v2482
    %v2583 = vpack.c.b16 %v2487, %v2485
    %v2584 = vpack.c.b16 %v2488, %v2486
    %v2585 = vpack.c.b16 %v2491, %v2489
    %v2586 = vpack.c.b16 %v2492, %v2490
    %v2587 = vpack.c.b16 %v2495, %v2493
    %v2588 = vpack.c.b16 %v2496, %v2494
    %v2589 = vpack.c.b16 %v2499, %v2497
    %v2590 = vpack.c.b16 %v2500, %v2498
    %v2591 = vpack.c.b16 %v2503, %v2501
    %v2592 = vpack.c.b16 %v2504, %v2502
    %v2593 = vpack.c.b16 %v2507, %v2505
    %v2594 = vpack.c.b16 %v2508, %v2506
    %v2595 = vpack.c.b16 %v2511, %v2509
    %v2596 = vpack.c.b16 %v2512, %v2510
    %v2597 = vpack.c.b16 %v2515, %v2513
    %v2598 = vpack.c.b16 %v2516, %v2514
    %v2599 = vpack.c.b16 %v2519, %v2517
    %v2600 = vpack.c.b16 %v2520, %v2518
    %v2601 = vpack.c.b16 %v2523, %v2521
    %v2602 = vpack.c.b16 %v2524, %v2522
    %v2603 = vpack.c.b16 %v2527, %v2525
    %v2604 = vpack.c.b16 %v2528, %v2526
    %v2605 = vpack.c.b16 %v2531, %v2529
    %v2606 = vpack.c.b16 %v2532, %v2530
    %v2607 = vpack.c.b16 %v2535, %v2533
    %v2608 = vpack.c.b16 %v2536, %v2534
    %v2609 = vpack.c.b16 %v2539, %v2537
    %v2610 = vpack.c.b16 %v2540, %v2538
    %v2611 = vpack.c.b16 %v2543, %v2541
    %v2612 = vpack.c.b16 %v2544, %v2542
    %v2613 = vpack.c.b16 %v2547, %v2545
    %v2614 = vpack.c.b16 %v2548, %v2546
    %v2615 = vpack.c.b16 %v2551, %v2549
    %v2616 = vpack.c.b16 %v2552, %v2550
    %2681 = vmatprep.subr.bf16.mxu0 %v2554
    %2682 = vmatpush1.bf16.msra.mxu0 %v2553
    %2683 = vmatprep.subr.bf16.mxu0 %v2556
    %2684 = vmatpush1.bf16.msra.mxu0 %v2555
    %2685 = vmatprep.subr.bf16.mxu0 %v2558
    %2686 = vmatpush1.bf16.msra.mxu0 %v2557
    %2687 = vmatprep.subr.bf16.mxu0 %v2560
    %2688 = vmatpush1.bf16.msra.mxu0 %v2559
    %2689 = vmatprep.subr.bf16.mxu0 %v2562
    %2690 = vmatpush1.bf16.msra.mxu0 %v2561
    %2691 = vmatprep.subr.bf16.mxu0 %v2564
    %2692 = vmatpush1.bf16.msra.mxu0 %v2563
    %2693 = vmatprep.subr.bf16.mxu0 %v2566
    %2694 = vmatpush1.bf16.msra.mxu0 %v2565
    %2695 = vmatprep.subr.bf16.mxu0 %v2568
    %2696 = vmatpush1.bf16.msra.mxu0 %v2567
    %2697 = vmatprep.subr.bf16.mxu0 %v2570
    %2698 = vmatpush1.bf16.msra.mxu0 %v2569
    %2699 = vmatprep.subr.bf16.mxu0 %v2572
    %2700 = vmatpush1.bf16.msra.mxu0 %v2571
    %2701 = vmatprep.subr.bf16.mxu0 %v2574
    %2702 = vmatpush1.bf16.msra.mxu0 %v2573
    %2703 = vmatprep.subr.bf16.mxu0 %v2576
    %2704 = vmatpush1.bf16.msra.mxu0 %v2575
    %2705 = vmatprep.subr.bf16.mxu0 %v2578
    %2706 = vmatpush1.bf16.msra.mxu0 %v2577
    %2707 = vmatprep.subr.bf16.mxu0 %v2580
    %2708 = vmatpush1.bf16.msra.mxu0 %v2579
    %2709 = vmatprep.subr.bf16.mxu0 %v2582
    %2710 = vmatpush1.bf16.msra.mxu0 %v2581
    %2711 = vmatprep.subr.bf16.mxu0 %v2584
    %2712 = vmatpush1.bf16.msra.mxu0 %v2583
    %2713 = vmatprep.mubr.bf16.mxu0 %v2270
    %2714 = vmatmul.mubr.bf16.gmra.mrb[0].mxu0 %v2269
    %v2715 = vpop.f32.mrb[0].mxu0
    %v2716 = vadd.f32 %v2354, %v2715
    %v2717 = vpop.f32.mrb[0].mxu0
    %v2718 = vadd.f32 %v2358, %v2717
    %v2719 = vpop.f32.mrb[0].mxu0
    %v2720 = vadd.f32 %v2354, %v2719
    %v2721 = vpop.f32.mrb[0].mxu0
    %v2722 = vadd.f32 %v2358, %v2721
    %2723 = vmatprep.mubr.bf16.mxu0 %v2274
    %2724 = vmatmul.mubr.bf16.gmra.mrb[0].mxu0 %v2273
    %v2725 = vpop.f32.mrb[0].mxu0
    %v2726 = vadd.f32 %v2354, %v2725
    %v2727 = vpop.f32.mrb[0].mxu0
    %v2728 = vadd.f32 %v2358, %v2727
    %v2729 = vpop.f32.mrb[0].mxu0
    %v2730 = vadd.f32 %v2354, %v2729
    %v2731 = vpop.f32.mrb[0].mxu0
    %v2732 = vadd.f32 %v2358, %v2731
    %2733 = vmatprep.mubr.bf16.mxu0 %v2278
    %2734 = vmatmul.mubr.bf16.gmra.mrb[0].mxu0 %v2277
    %v2735 = vpop.f32.mrb[0].mxu0
    %v2736 = vadd.f32 %v2354, %v2735
    %v2737 = vpop.f32.mrb[0].mxu0
    %v2738 = vadd.f32 %v2358, %v2737
    %v2739 = vpop.f32.mrb[0].mxu0
    %v2740 = vadd.f32 %v2354, %v2739
    %v2741 = vpop.f32.mrb[0].mxu0
    %v2742 = vadd.f32 %v2358, %v2741
    %2743 = vmatprep.mubr.bf16.mxu0 %v2282
    %2744 = vmatmul.mubr.bf16.gmra.mrb[0].mxu0 %v2281
    %v2745 = vpop.f32.mrb[0].mxu0
    %v2746 = vadd.f32 %v2354, %v2745
    %v2747 = vpop.f32.mrb[0].mxu0
    %v2748 = vadd.f32 %v2358, %v2747
    %v2749 = vpop.f32.mrb[0].mxu0
    %v2750 = vpop.f32.mrb[0].mxu0
    %2751 = vdwg.mxu0
    %2752 = vmatprep.subr.bf16.mxu0 %v2586
    %2753 = vmatpush1.bf16.msra.mxu0 %v2585
    %2754 = vmatprep.subr.bf16.mxu0 %v2588
    %2755 = vmatpush1.bf16.msra.mxu0 %v2587
    %2756 = vmatprep.subr.bf16.mxu0 %v2590
    %2757 = vmatpush1.bf16.msra.mxu0 %v2589
    %2758 = vmatprep.subr.bf16.mxu0 %v2592
    %2759 = vmatpush1.bf16.msra.mxu0 %v2591
    %2760 = vmatprep.subr.bf16.mxu0 %v2594
    %2761 = vmatpush1.bf16.msra.mxu0 %v2593
    %2762 = vmatprep.subr.bf16.mxu0 %v2596
    %2763 = vmatpush1.bf16.msra.mxu0 %v2595
    %2764 = vmatprep.subr.bf16.mxu0 %v2598
    %2765 = vmatpush1.bf16.msra.mxu0 %v2597
    %2766 = vmatprep.subr.bf16.mxu0 %v2600
    %2767 = vmatpush1.bf16.msra.mxu0 %v2599
    %2768 = vmatprep.subr.bf16.mxu0 %v2602
    %2769 = vmatpush1.bf16.msra.mxu0 %v2601
    %2770 = vmatprep.subr.bf16.mxu0 %v2604
    %2771 = vmatpush1.bf16.msra.mxu0 %v2603
    %2772 = vmatprep.subr.bf16.mxu0 %v2606
    %2773 = vmatpush1.bf16.msra.mxu0 %v2605
    %2774 = vmatprep.subr.bf16.mxu0 %v2608
    %2775 = vmatpush1.bf16.msra.mxu0 %v2607
    %2776 = vmatprep.subr.bf16.mxu0 %v2610
    %2777 = vmatpush1.bf16.msra.mxu0 %v2609
    %2778 = vmatprep.subr.bf16.mxu0 %v2612
    %2779 = vmatpush1.bf16.msra.mxu0 %v2611
    %2780 = vmatprep.subr.bf16.mxu0 %v2614
    %2781 = vmatpush1.bf16.msra.mxu0 %v2613
    %2782 = vmatprep.subr.bf16.mxu0 %v2616
    %2783 = vmatpush1.bf16.msra.mxu0 %v2615
    %2784 = vmatprep.mubr.bf16.mxu0 %v2272
    %2785 = vmatmul.mubr.bf16.gmra.mrb[0].mxu0 %v2271
    %v2786 = vpop.f32.mrb[0].mxu0
    %v2787 = vadd.f32 %v2716, %v2786
    %v2788 = vpop.f32.mrb[0].mxu0
    %v2789 = vadd.f32 %v2718, %v2788
    %v2790 = vpop.f32.mrb[0].mxu0
    %v2791 = vadd.f32 %v2720, %v2790
    %v2792 = vpop.f32.mrb[0].mxu0
    %v2793 = vadd.f32 %v2722, %v2792
    %2794 = vmatprep.mubr.bf16.mxu0 %v2276
    %2795 = vmatmul.mubr.bf16.gmra.mrb[0].mxu0 %v2275
    %v2796 = vpop.f32.mrb[0].mxu0
    %v2797 = vadd.f32 %v2726, %v2796
    %v2798 = vpop.f32.mrb[0].mxu0
    %v2799 = vadd.f32 %v2728, %v2798
    %v2800 = vpop.f32.mrb[0].mxu0
    %v2801 = vadd.f32 %v2730, %v2800
    %v2802 = vpop.f32.mrb[0].mxu0
    %v2803 = vadd.f32 %v2732, %v2802
    %2804 = vmatprep.mubr.bf16.mxu0 %v2280
    %2805 = vmatmul.mubr.bf16.gmra.mrb[0].mxu0 %v2279
    %v2806 = vpop.f32.mrb[0].mxu0
    %v2807 = vadd.f32 %v2736, %v2806
    %v2808 = vpop.f32.mrb[0].mxu0
    %v2809 = vadd.f32 %v2738, %v2808
    %v2810 = vpop.f32.mrb[0].mxu0
    %v2811 = vadd.f32 %v2740, %v2810
    %v2812 = vpop.f32.mrb[0].mxu0
    %v2813 = vadd.f32 %v2742, %v2812
    %2814 = vmatprep.mubr.bf16.mxu0 %v2284
    %2815 = vmatmul.mubr.bf16.gmra.mrb[0].mxu0 %v2283
    %v2816 = vpop.f32.mrb[0].mxu0
    %v2817 = vadd.f32 %v2746, %v2816
    %v2818 = vpop.f32.mrb[0].mxu0
    %v2819 = vadd.f32 %v2748, %v2818
    %v2820 = vpop.f32.mrb[0].mxu0
    %v2821 = vpop.f32.mrb[0].mxu0
    %2822 = vdwg.mxu0
    %vm2823 = vcmp.ge.f32.partialorder %v2787, 0.0
    %vm2824 = vcmp.ge.f32.partialorder %v2789, 0.0
    %vm2825 = vcmp.ge.f32.partialorder %v2791, 0.0
    %vm2826 = vcmp.ge.f32.partialorder %v2793, 0.0
    %vm2827 = vcmp.ge.f32.partialorder %v2797, 0.0
    %vm2828 = vcmp.ge.f32.partialorder %v2799, 0.0
    %vm2829 = vcmp.ge.f32.partialorder %v2801, 0.0
    %vm2830 = vcmp.ge.f32.partialorder %v2803, 0.0
    %vm2831 = vcmp.ge.f32.partialorder %v2807, 0.0
    %vm2832 = vcmp.ge.f32.partialorder %v2809, 0.0
    %vm2833 = vcmp.ge.f32.partialorder %v2811, 0.0
    %vm2834 = vcmp.ge.f32.partialorder %v2813, 0.0
    %vm2835 = vcmp.ge.f32.partialorder %v2817, 0.0
    %vm2836 = vcmp.ge.f32.partialorder %v2819, 0.0
    %v2837 = vmul.f32 %v2787, 0.2
    %v2838 = vmul.f32 %v2789, 0.2
    %v2839 = vmul.f32 %v2791, 0.2
    %v2840 = vmul.f32 %v2793, 0.2
    %v2841 = vmul.f32 %v2797, 0.2
    %v2842 = vmul.f32 %v2799, 0.2
    %v2843 = vmul.f32 %v2801, 0.2
    %v2844 = vmul.f32 %v2803, 0.2
    %v2845 = vmul.f32 %v2807, 0.2
    %v2846 = vmul.f32 %v2809, 0.2
    %v2847 = vmul.f32 %v2811, 0.2
    %v2848 = vmul.f32 %v2813, 0.2
    %v2849 = vmul.f32 %v2817, 0.2
    %v2850 = vmul.f32 %v2819, 0.2
    %v2851 = vsel %vm2823, %v2787, %v2837
    %v2852 = vsel %vm2824, %v2789, %v2838
    %v2853 = vsel %vm2825, %v2791, %v2839
    %v2854 = vsel %vm2826, %v2793, %v2840
    %v2855 = vsel %vm2827, %v2797, %v2841
    %v2856 = vsel %vm2828, %v2799, %v2842
    %v2857 = vsel %vm2829, %v2801, %v2843
    %v2858 = vsel %vm2830, %v2803, %v2844
    %v2859 = vsel %vm2831, %v2807, %v2845
    %v2860 = vsel %vm2832, %v2809, %v2846
    %v2861 = vsel %vm2833, %v2811, %v2847
    %v2862 = vsel %vm2834, %v2813, %v2848
    %v2863 = vsel %vm2835, %v2817, %v2849
    %v2864 = vsel %vm2836, %v2819, %v2850
    %v2865 = vpack.c.bf16 %v2853, %v2851
    %v2866 = vpack.c.bf16 %v2854, %v2852
    %v2867 = vpack.c.bf16 %v2857, %v2855
    %v2868 = vpack.c.bf16 %v2858, %v2856
    %v2869 = vpack.c.bf16 %v2861, %v2859
    %v2870 = vpack.c.bf16 %v2862, %v2860
    %v2871 = vpack.c.bf16 %v2863, %v2863
    %v2872 = vpack.c.bf16 %v2864, %v2864
    %v2873 = vld [vmem:[#allocation8] sm:$0xf]
    %v2874 = vld [vmem:[#allocation8 + $0x4] sm:$0xf]
    %v2875 = vld [vmem:[#allocation8 + $0x8] sm:$0xf]
    %v2876 = vld [vmem:[#allocation8 + $0xc] sm:$0xf]
    %v2877 = vld [vmem:[#allocation8 + $0x10] sm:$0xf]
    %v2878 = vld [vmem:[#allocation8 + $0x14] sm:$0xf]
    %v2879 = vld [vmem:[#allocation8 + $0x18] sm:$0xf]
    %v2880 = vld [vmem:[#allocation8 + $0x1c] sm:$0xf]
    %v2881 = vld [vmem:[#allocation8 + $0x20] sm:$0xf]
    %v2882 = vld [vmem:[#allocation8 + $0x24] sm:$0xf]
    %v2883 = vld [vmem:[#allocation8 + $0x28] sm:$0xf]
    %v2884 = vld [vmem:[#allocation8 + $0x2c] sm:$0xf]
    %v2885 = vld [vmem:[#allocation8 + $0x30] sm:$0xf]
    %v2886 = vld [vmem:[#allocation8 + $0x34] sm:$0xf]
    %v2887 = vld [vmem:[#allocation8 + $0x38] sm:$0xf]
    %v2888 = vld [vmem:[#allocation8 + $0x3c] sm:$0xf]
    %v2889 = vld [vmem:[#allocation8 + $0x40] sm:$0xf]
    %v2890 = vld [vmem:[#allocation8 + $0x44] sm:$0xf]
    %v2891 = vld [vmem:[#allocation8 + $0x48] sm:$0xf]
    %v2892 = vld [vmem:[#allocation8 + $0x4c] sm:$0xf]
    %v2893 = vld [vmem:[#allocation8 + $0x50] sm:$0xf]
    %v2894 = vld [vmem:[#allocation8 + $0x54] sm:$0xf]
    %v2895 = vld [vmem:[#allocation8 + $0x58] sm:$0xf]
    %v2896 = vld [vmem:[#allocation8 + $0x5c] sm:$0xf]
    %v2897 = vld [vmem:[#allocation8 + $0x60] sm:$0xf]
    %v2898 = vld [vmem:[#allocation8 + $0x64] sm:$0xf]
    %v2899 = vld [vmem:[#allocation8 + $0x68] sm:$0xf]
    %v2900 = vld [vmem:[#allocation8 + $0x6c] sm:$0xf]
    %v2901 = vld [vmem:[#allocation8 + $0x70] sm:$0xf]
    %v2902 = vld [vmem:[#allocation8 + $0x74] sm:$0xf]
    %v2903 = vld [vmem:[#allocation8 + $0x78] sm:$0xf]
    %v2904 = vld [vmem:[#allocation8 + $0x7c] sm:$0xf]
    %v2905 = vld [vmem:[%s6] sm:$0x1]
    %v2907 = vlaneseq
    %v2908 = vshrl.u32 %v2907, 7
    %v2909 = vsub.s32 0, %v2908
    %v2910 = vrot.slane %v2905, %v2909
    %v2944 = vunpack.c.l.b16 %v2873
    %v2945 = vunpack.c.l.b16 %v2874
    %v2946 = vunpack.c.l.b16 %v2875
    %v2947 = vunpack.c.l.b16 %v2876
    %v2948 = vunpack.c.l.b16 %v2877
    %v2949 = vunpack.c.l.b16 %v2878
    %v2950 = vunpack.c.l.b16 %v2879
    %v2951 = vunpack.c.l.b16 %v2880
    %v2952 = vunpack.c.l.b16 %v2881
    %v2953 = vunpack.c.l.b16 %v2882
    %v2954 = vunpack.c.l.b16 %v2883
    %v2955 = vunpack.c.l.b16 %v2884
    %v2956 = vunpack.c.l.b16 %v2885
    %v2957 = vunpack.c.l.b16 %v2886
    %v2958 = vunpack.c.l.b16 %v2887
    %v2959 = vunpack.c.l.b16 %v2888
    %v2960 = vunpack.c.l.b16 %v2889
    %v2961 = vunpack.c.l.b16 %v2890
    %v2962 = vunpack.c.l.b16 %v2891
    %v2963 = vunpack.c.l.b16 %v2892
    %v2964 = vunpack.c.l.b16 %v2893
    %v2965 = vunpack.c.l.b16 %v2894
    %v2966 = vunpack.c.l.b16 %v2895
    %v2967 = vunpack.c.l.b16 %v2896
    %v2968 = vunpack.c.l.b16 %v2897
    %v2969 = vunpack.c.l.b16 %v2898
    %v2970 = vunpack.c.l.b16 %v2899
    %v2971 = vunpack.c.l.b16 %v2900
    %v2972 = vunpack.c.l.b16 %v2901
    %v2973 = vunpack.c.l.b16 %v2902
    %v2974 = vunpack.c.l.b16 %v2903
    %v2975 = vunpack.c.l.b16 %v2904
    %v2976 = vpack.c.b16 %v2945, %v2944
    %v2977 = vpack.c.b16 %v2947, %v2946
    %v2978 = vpack.c.b16 %v2949, %v2948
    %v2979 = vpack.c.b16 %v2951, %v2950
    %v2980 = vpack.c.b16 %v2953, %v2952
    %v2981 = vpack.c.b16 %v2955, %v2954
    %v2982 = vpack.c.b16 %v2957, %v2956
    %v2983 = vpack.c.b16 %v2959, %v2958
    %v2984 = vpack.c.b16 %v2961, %v2960
    %v2985 = vpack.c.b16 %v2963, %v2962
    %v2986 = vpack.c.b16 %v2965, %v2964
    %v2987 = vpack.c.b16 %v2967, %v2966
    %v2988 = vpack.c.b16 %v2969, %v2968
    %v2989 = vpack.c.b16 %v2971, %v2970
    %v2990 = vpack.c.b16 %v2973, %v2972
    %v2991 = vpack.c.b16 %v2975, %v2974
    %3008 = vmatprep.subr.bf16.mxu0 0
    %3009 = vmatpush1.bf16.msra.mxu0 %v2976
    %3010 = vmatprep.subr.bf16.mxu0 0
    %3011 = vmatpush1.bf16.msra.mxu0 %v2977
    %3012 = vmatprep.subr.bf16.mxu0 0
    %3013 = vmatpush1.bf16.msra.mxu0 %v2978
    %3014 = vmatprep.subr.bf16.mxu0 0
    %3015 = vmatpush1.bf16.msra.mxu0 %v2979
    %3016 = vmatprep.subr.bf16.mxu0 0
    %3017 = vmatpush1.bf16.msra.mxu0 %v2980
    %3018 = vmatprep.subr.bf16.mxu0 0
    %3019 = vmatpush1.bf16.msra.mxu0 %v2981
    %3020 = vmatprep.subr.bf16.mxu0 0
    %3021 = vmatpush1.bf16.msra.mxu0 %v2982
    %3022 = vmatprep.subr.bf16.mxu0 0
    %3023 = vmatpush1.bf16.msra.mxu0 %v2983
    %3024 = vmatprep.subr.bf16.mxu0 0
    %3025 = vmatpush1.bf16.msra.mxu0 %v2984
    %3026 = vmatprep.subr.bf16.mxu0 0
    %3027 = vmatpush1.bf16.msra.mxu0 %v2985
    %3028 = vmatprep.subr.bf16.mxu0 0
    %3029 = vmatpush1.bf16.msra.mxu0 %v2986
    %3030 = vmatprep.subr.bf16.mxu0 0
    %3031 = vmatpush1.bf16.msra.mxu0 %v2987
    %3032 = vmatprep.subr.bf16.mxu0 0
    %3033 = vmatpush1.bf16.msra.mxu0 %v2988
    %3034 = vmatprep.subr.bf16.mxu0 0
    %3035 = vmatpush1.bf16.msra.mxu0 %v2989
    %3036 = vmatprep.subr.bf16.mxu0 0
    %3037 = vmatpush1.bf16.msra.mxu0 %v2990
    %3038 = vmatprep.subr.bf16.mxu0 0
    %3039 = vmatpush1.bf16.msra.mxu0 %v2991
    %3040 = vmatprep.mubr.bf16.mxu0 %v2866
    %3041 = vmatmul.mubr.bf16.gmra.mrb[0].mxu0 %v2865
    %v3042 = vpop.f32.mrb[0].mxu0
    %v3043 = vadd.f32 %v2910, %v3042
    %v3044 = vpop.f32.mrb[0].mxu0
    %v3045 = vpop.f32.mrb[0].mxu0
    %v3046 = vadd.f32 %v2910, %v3045
    %v3047 = vpop.f32.mrb[0].mxu0
    %3048 = vmatprep.mubr.bf16.mxu0 %v2868
    %3049 = vmatmul.mubr.bf16.gmra.mrb[0].mxu0 %v2867
    %v3050 = vpop.f32.mrb[0].mxu0
    %v3051 = vadd.f32 %v2910, %v3050
    %v3052 = vpop.f32.mrb[0].mxu0
    %v3053 = vpop.f32.mrb[0].mxu0
    %v3054 = vadd.f32 %v2910, %v3053
    %v3055 = vpop.f32.mrb[0].mxu0
    %3056 = vmatprep.mubr.bf16.mxu0 %v2870
    %3057 = vmatmul.mubr.bf16.gmra.mrb[0].mxu0 %v2869
    %v3058 = vpop.f32.mrb[0].mxu0
    %v3059 = vadd.f32 %v2910, %v3058
    %v3060 = vpop.f32.mrb[0].mxu0
    %v3061 = vpop.f32.mrb[0].mxu0
    %v3062 = vadd.f32 %v2910, %v3061
    %v3063 = vpop.f32.mrb[0].mxu0
    %3064 = vmatprep.mubr.bf16.mxu0 %v2872
    %3065 = vmatmul.mubr.bf16.gmra.mrb[0].mxu0 %v2871
    %v3066 = vpop.f32.mrb[0].mxu0
    %v3067 = vadd.f32 %v2910, %v3066
    %v3068 = vpop.f32.mrb[0].mxu0
    %v3069 = vpop.f32.mrb[0].mxu0
    %v3070 = vpop.f32.mrb[0].mxu0
    %3071 = vdwg.mxu0
    %vm3072 = vcmp.ge.f32.partialorder %v3043, 0.0
    %vm3073 = vcmp.ge.f32.partialorder %v3046, 0.0
    %vm3074 = vcmp.ge.f32.partialorder %v3051, 0.0
    %vm3075 = vcmp.ge.f32.partialorder %v3054, 0.0
    %vm3076 = vcmp.ge.f32.partialorder %v3059, 0.0
    %vm3077 = vcmp.ge.f32.partialorder %v3062, 0.0
    %vm3078 = vcmp.ge.f32.partialorder %v3067, 0.0
    %v3079 = vmul.f32 %v3043, 0.2
    %v3080 = vmul.f32 %v3046, 0.2
    %v3081 = vmul.f32 %v3051, 0.2
    %v3082 = vmul.f32 %v3054, 0.2
    %v3083 = vmul.f32 %v3059, 0.2
    %v3084 = vmul.f32 %v3062, 0.2
    %v3085 = vmul.f32 %v3067, 0.2
    %v3086 = vsel %vm3072, %v3043, %v3079
    %v3087 = vsel %vm3073, %v3046, %v3080
    %v3088 = vsel %vm3074, %v3051, %v3081
    %v3089 = vsel %vm3075, %v3054, %v3082
    %v3090 = vsel %vm3076, %v3059, %v3083
    %v3091 = vsel %vm3077, %v3062, %v3084
    %v3092 = vsel %vm3078, %v3067, %v3085
    %v3093 = vld [vmem:[%s7] sm:$0x1]
    %v3095 = vlaneseq
    %v3096 = vshrl.u32 %v3095, 7
    %v3097 = vsub.s32 0, %v3096
    %v3098 = vrot.slane %v3093, %v3097
    %v3100 = vmul.f32 %v3086, %v3098
    %v3101 = vmul.f32 %v3087, %v3098
    %v3102 = vmul.f32 %v3088, %v3098
    %v3103 = vmul.f32 %v3089, %v3098
    %v3104 = vmul.f32 %v3090, %v3098
    %v3105 = vmul.f32 %v3091, %v3098
    %v3106 = vmul.f32 %v3092, %v3098
    %3107 = vadd.xlane.f32.xlu0 %v3100
    %v3108 = vpop.xlane.xlu0 %3107
    %3109 = vadd.xlane.f32.xlu0 %v3101
    %v3110 = vpop.xlane.xlu0 %3109
    %3111 = vadd.xlane.f32.xlu0 %v3102
    %v3112 = vpop.xlane.xlu0 %3111
    %3113 = vadd.xlane.f32.xlu0 %v3103
    %v3114 = vpop.xlane.xlu0 %3113
    %3115 = vadd.xlane.f32.xlu0 %v3104
    %v3116 = vpop.xlane.xlu0 %3115
    %3117 = vadd.xlane.f32.xlu0 %v3105
    %v3118 = vpop.xlane.xlu0 %3117
    %3119 = vadd.xlane.f32.xlu0 %v3106
    %v3120 = vpop.xlane.xlu0 %3119
    %v3121 = vld [vmem:[#allocation2] sm:$0x1]
    %v3123 = vlaneseq
    %v3124 = vshrl.u32 %v3123, 7
    %v3125 = vsub.s32 0, %v3124
    %v3126 = vrot.slane %v3121, %v3125
    %v3128 = vadd.f32 %v3108, %v3126
    %v3129 = vadd.f32 %v3110, %v3126
    %v3130 = vadd.f32 %v3112, %v3126
    %v3131 = vadd.f32 %v3114, %v3126
    %v3132 = vadd.f32 %v3116, %v3126
    %v3133 = vadd.f32 %v3118, %v3126
    %v3134 = vadd.f32 %v3120, %v3126
    %vm3135 = vcmask 7168
    %3136 = vst.msk [vmem:[%s9] sm:$0xff] %vm3135, %v3128
    %3137 = vst.msk [vmem:[%s9 + $0x8] sm:$0xff] %vm3135, %v3129
    %3138 = vst.msk [vmem:[%s9 + $0x10] sm:$0xff] %vm3135, %v3130
    %3139 = vst.msk [vmem:[%s9 + $0x18] sm:$0xff] %vm3135, %v3131
    %3140 = vst.msk [vmem:[%s9 + $0x20] sm:$0xff] %vm3135, %v3132
    %3141 = vst.msk [vmem:[%s9 + $0x28] sm:$0xff] %vm3135, %v3133
    %3142 = vst.msk [vmem:[%s9 + $0x30] sm:$0xff] %vm3135, %v3134
    // Predicated region
    $region54: #{tpu_custom_call.1} parent=1 // pred_check
      _
    $region55: #{tpu_custom_call.1} parent=1 // pred_check_branch
      %3144 = sbr.rel (0) target = $region57
    $region56: #{tpu_custom_call.1} parent=1 // pred_region
      _
    $region57: #{tpu_custom_call.1} parent=1 // pred_fallthru
      _
    // Predicated region
    $region58: #{tpu_custom_call.1} parent=1 // pred_check
      _
    $region59: #{tpu_custom_call.1} parent=1 // pred_check_branch
      %3146 = sbr.rel (0) target = $region61
    $region60: #{tpu_custom_call.1} parent=1 // pred_region
      _
    $region61: #{tpu_custom_call.1} parent=1 // pred_fallthru
      _
    %3147 = vsyncpa [#allocation4], 1
    %3148 = vsyncpa [#allocation6], 1
    %3149 = vsyncpa [#allocation9], 1

</llo_original>
